<compile_context>
chip_gen: v7x
topology: tpu7x:2x2x1
jax: 0.10.0
libtpu: 0.0.40
codegen_flags: <defaults>
</compile_context>

<pallas_src>
import functools

import jax
import jax.numpy as jnp
from jax.experimental import pallas as pl
from jax.experimental.pallas import tpu as pltpu

EPS = 1e-5


def _round_up(x, m):
    return (x + m - 1) // m * m


def simclr_kernel(x_ref, wv_ref, bv_ref,
                  w1_ref, b1_ref, g1_ref, be1_ref,
                  w2_ref, b2_ref, g2_ref, be2_ref,
                  w3_ref, b3_ref,
                  out_ref, acc_ref):
    """grid = (aug, k). k tiles the flattened-image axis of the visual projection."""
    k = pl.program_id(1)
    nk = pl.num_programs(1)

    # ---- visual projection: K-tiled bf16 matmul, f32 accumulation ---------------
    @pl.when(k == 0)
    def _():
        acc_ref[...] = jnp.zeros_like(acc_ref)

    acc_ref[...] += jnp.dot(x_ref[0], wv_ref[...],
                            preferred_element_type=jnp.float32)

    # ---- SSL MLP (Linear -> BN -> ReLU -> Linear -> BN -> ReLU -> Linear) -------
    @pl.when(k == nk - 1)
    def _():
        h = acc_ref[...] + bv_ref[...]                      # [B, Vw_pad] f32

        def batchnorm(z, gamma, beta):
            # Training-mode (Sync)BatchNorm: biased batch stats, affine folded into
            # a single scale/shift (2 VPU ops per element; rsqrt goes to the EUP).
            mu = jnp.mean(z, axis=0, keepdims=True)
            var = jnp.mean((z - mu) ** 2, axis=0, keepdims=True)
            scale = gamma * jax.lax.rsqrt(var + EPS)
            shift = beta - mu * scale
            return z * scale + shift

        # MLP weights are bf16 in HBM (halved DMA); these matmuls are tiny, so we
        # upcast the resident weight tiles and keep the activations in f32 to match
        # the module's numerics exactly (no activation rounding).
        z1 = jnp.dot(h, w1_ref[...].astype(jnp.float32),
                     preferred_element_type=jnp.float32) + b1_ref[...]
        a1 = jnp.maximum(batchnorm(z1, g1_ref[...], be1_ref[...]), 0.0)

        z2 = jnp.dot(a1, w2_ref[...].astype(jnp.float32),
                     preferred_element_type=jnp.float32) + b2_ref[...]
        a2 = jnp.maximum(batchnorm(z2, g2_ref[...], be2_ref[...]), 0.0)

        out = jnp.dot(a2, w3_ref[...].astype(jnp.float32),
                      preferred_element_type=jnp.float32) + b3_ref[...]
        out_ref[0] = out.astype(out_ref.dtype)


def simclr_forward(aug1, aug2, params):
    """aug1, aug2: NCHW images [B, C, H, W]. Returns dict of embeddings [B, ssl_emb_dim]."""
    (wv, bv, w1, b1, g1, be1, w2, b2, g2, be2, w3, b3) = params

    B = aug1.shape[0]
    din = aug1.shape[1] * aug1.shape[2] * aug1.shape[3]
    vw, mlp, emb = wv.shape[1], w1.shape[1], w3.shape[1]

    LANE = 128
    vw_p = _round_up(vw, LANE)
    mlp_p = _round_up(mlp, LANE)
    emb_p = _round_up(emb, LANE)

    # K tiling of the flattened-image axis.
    din_128 = _round_up(din, LANE)
    tk = min(din_128, 512)
    din_p = _round_up(din_128, tk)
    nk = din_p // tk

    def pad2(a, rows, cols):
        return jnp.pad(a, ((0, rows - a.shape[0]), (0, cols - a.shape[1])))

    # bf16 weights (f32 accumulation inside the kernel); zero lane-padding keeps the
    # padded features identically zero through BN/ReLU (gamma/beta/bias padded with 0).
    wv_p = pad2(wv, din_p, vw_p).astype(jnp.bfloat16)
    w1_p = pad2(w1, vw_p, mlp_p).astype(jnp.bfloat16)
    w2_p = pad2(w2, mlp_p, mlp_p).astype(jnp.bfloat16)
    w3_p = pad2(w3, mlp_p, emb_p).astype(jnp.bfloat16)
    bv_p = pad2(bv, 1, vw_p)
    b1_p, g1_p, be1_p = (pad2(a, 1, mlp_p) for a in (b1, g1, be1))
    b2_p, g2_p, be2_p = (pad2(a, 1, mlp_p) for a in (b2, g2, be2))
    b3_p = pad2(b3, 1, emb_p)

    # Stack + pad + bf16-cast fuse into one XLA producer; bf16 halves the bytes the
    # kernel streams from HBM for the bandwidth-dominant x @ wv projection.
    x = jnp.stack([aug1.reshape(B, din), aug2.reshape(B, din)], axis=0)
    x = jnp.pad(x, ((0, 0), (0, 0), (0, din_p - din))).astype(jnp.bfloat16)

    def wspec(arr):
        nd = arr.ndim
        return pl.BlockSpec(arr.shape, lambda a, k, _nd=nd: (0,) * _nd)

    # Explicit VMEM budget (double-buffered tiles + resident params + scratch),
    # clamped so it is safe on v7x's 64 MiB VMEM.
    def _vmem_budget():
        bs = _round_up(B, 8)
        bufs = 2
        total = 0
        total += bufs * bs * tk * 2                                          # x tile (bf16)
        total += bufs * tk * vw_p * 2                                        # wv tile (bf16)
        total += bufs * (vw_p * mlp_p + mlp_p * mlp_p + mlp_p * emb_p) * 2   # w1/w2/w3 (bf16)
        total += bufs * 8 * (vw_p + 6 * mlp_p + emb_p) * 4                   # bias/gamma/beta rows (f32)
        total += bufs * bs * emb_p * 4                                       # out tile (f32)
        total += bs * vw_p * 4                                               # accumulator scratch
        total += 6 * bs * mlp_p * 4                                          # in-kernel temporaries headroom
        return total

    vmem_limit = int(min(48 << 20, max(16 << 20, 2 * _vmem_budget() + (4 << 20))))

    flops = 2 * B * 2 * (din_p * vw_p + vw_p * mlp_p + mlp_p * mlp_p + mlp_p * emb_p)
    bytes_accessed = (x.size * 2
                      + 2 * 2 * (wv_p.size + w1_p.size + w2_p.size + w3_p.size)
                      + 2 * B * emb_p * 4)
    cost = pl.CostEstimate(flops=int(flops), transcendentals=0,
                           bytes_accessed=int(bytes_accessed))

    out = pl.pallas_call(
        simclr_kernel,
        out_shape=jax.ShapeDtypeStruct((2, B, emb_p), jnp.float32),
        grid_spec=pltpu.PrefetchScalarGridSpec(
            num_scalar_prefetch=0,
            grid=(2, nk),
            in_specs=[
                pl.BlockSpec((1, B, tk), lambda a, k: (a, 0, k)),
                pl.BlockSpec((tk, vw_p), lambda a, k: (k, 0)),
                wspec(bv_p),
                wspec(w1_p), wspec(b1_p), wspec(g1_p), wspec(be1_p),
                wspec(w2_p), wspec(b2_p), wspec(g2_p), wspec(be2_p),
                wspec(w3_p), wspec(b3_p),
            ],
            out_specs=pl.BlockSpec((1, B, emb_p), lambda a, k: (a, 0, 0)),
            scratch_shapes=[pltpu.VMEM((B, vw_p), jnp.float32)],
        ),
        compiler_params=pltpu.CompilerParams(
            dimension_semantics=("parallel", "arbitrary"),
            vmem_limit_bytes=vmem_limit),
        cost_estimate=cost,
    )(x, wv_p, bv_p, w1_p, b1_p, g1_p, be1_p, w2_p, b2_p, g2_p, be2_p, w3_p, b3_p)

    out = out[:, :, :emb]
    return {"aug1_embed": out[0], "aug2_embed": out[1]}


def init_params(key, din, vision_width, mlp_dim, emb_dim):
    ks = jax.random.split(key, 8)
    wv = jax.random.normal(ks[0], (din, vision_width), jnp.float32) * 0.02
    bv = jax.random.normal(ks[1], (1, vision_width), jnp.float32) * 0.01
    w1 = jax.random.normal(ks[2], (vision_width, mlp_dim), jnp.float32) * 0.05
    b1 = jax.random.normal(ks[3], (1, mlp_dim), jnp.float32) * 0.01
    g1 = jnp.ones((1, mlp_dim), jnp.float32)
    be1 = jnp.zeros((1, mlp_dim), jnp.float32)
    w2 = jax.random.normal(ks[4], (mlp_dim, mlp_dim), jnp.float32) * 0.05
    b2 = jax.random.normal(ks[5], (1, mlp_dim), jnp.float32) * 0.01
    g2 = jnp.ones((1, mlp_dim), jnp.float32)
    be2 = jnp.zeros((1, mlp_dim), jnp.float32)
    w3 = jax.random.normal(ks[6], (mlp_dim, emb_dim), jnp.float32) * 0.05
    b3 = jax.random.normal(ks[7], (1, emb_dim), jnp.float32) * 0.01
    return (wv, bv, w1, b1, g1, be1, w2, b2, g2, be2, w3, b3)


def reference_forward(aug1, aug2, params):
    """Pure-JAX reference. Mirrors the kernel's bf16 storage of x / weight matrices
    (values rounded to bf16) but does all math in f32, like the kernel."""
    (wv, bv, w1, b1, g1, be1, w2, b2, g2, be2, w3, b3) = params
    rnd = lambda a: a.astype(jnp.bfloat16).astype(jnp.float32)
    dot = functools.partial(jnp.dot, precision=jax.lax.Precision.HIGHEST)

    def bn(z, g, b):
        mu = jnp.mean(z, axis=0, keepdims=True)
        var = jnp.mean((z - mu) ** 2, axis=0, keepdims=True)
        return (z - mu) * jax.lax.rsqrt(var + EPS) * g + b

    def one(img):
        B = img.shape[0]
        x = rnd(img.reshape(B, -1))
        h = dot(x, rnd(wv)) + bv
        a1 = jnp.maximum(bn(dot(h, rnd(w1)) + b1, g1, be1), 0.0)
        a2 = jnp.maximum(bn(dot(a1, rnd(w2)) + b2, g2, be2), 0.0)
        return dot(a2, rnd(w3)) + b3

    return {"aug1_embed": one(aug1), "aug2_embed": one(aug2)}


if __name__ == "__main__":
    # Small shapes consistent with the module's forward.
    B, C, H, W = 2, 4, 16, 16          # NCHW images
    vision_width = 32
    ssl_mlp_dim = 64
    ssl_emb_dim = 32
    din = C * H * W

    key = jax.random.PRNGKey(0)
    k_a1, k_a2, k_p = jax.random.split(key, 3)
    aug1 = jax.random.normal(k_a1, (B, C, H, W), jnp.float32)
    aug2 = jax.random.normal(k_a2, (B, C, H, W), jnp.float32)

    params = init_params(k_p, din, vision_width, ssl_mlp_dim, ssl_emb_dim)

    out = simclr_forward(aug1, aug2, params)
    jax.block_until_ready(out)

    ref = reference_forward(aug1, aug2, params)
    for name in ("aug1_embed", "aug2_embed"):
        assert out[name].shape == (B, ssl_emb_dim)
        assert jnp.allclose(out[name], ref[name], atol=1e-3, rtol=1e-3), f"mismatch in {name}"

    print("KERNEL_OK")
</pallas_src>

<mosaic_0001>
module attributes {stable_mosaic.version = 11 : i64} {
  func.func @simclr_kernel(%arg0: i32, %arg1: i32, %arg2: memref<1x2x512xbf16, #tpu.memory_space<vmem>>, %arg3: memref<512x128xbf16, #tpu.memory_space<vmem>>, %arg4: memref<1x128xf32, #tpu.memory_space<vmem>>, %arg5: memref<128x128xbf16, #tpu.memory_space<vmem>>, %arg6: memref<1x128xf32, #tpu.memory_space<vmem>>, %arg7: memref<1x128xf32, #tpu.memory_space<vmem>>, %arg8: memref<1x128xf32, #tpu.memory_space<vmem>>, %arg9: memref<128x128xbf16, #tpu.memory_space<vmem>>, %arg10: memref<1x128xf32, #tpu.memory_space<vmem>>, %arg11: memref<1x128xf32, #tpu.memory_space<vmem>>, %arg12: memref<1x128xf32, #tpu.memory_space<vmem>>, %arg13: memref<128x128xbf16, #tpu.memory_space<vmem>>, %arg14: memref<1x128xf32, #tpu.memory_space<vmem>>, %arg15: memref<1x2x128xf32, #tpu.memory_space<vmem>>, %arg16: memref<2x128xf32, #tpu.memory_space<vmem>>) attributes {dimension_semantics = [#tpu.dimension_semantics<parallel>, #tpu.dimension_semantics<arbitrary>], iteration_bounds = array<i64: 2, 2>, scalar_prefetch = 0 : i64, scratch_operands = 1 : i64, tpu.core_type = #tpu.core_type<tc>, window_params = [{transform_indices = @transform_0, window_bounds = array<i64: 1, 2, 512>}, {transform_indices = @transform_1, window_bounds = array<i64: 512, 128>}, {pipeline_mode = #tpu.pipeline_mode<synchronous>, transform_indices = @transform_2, window_bounds = array<i64: 1, 128>}, {pipeline_mode = #tpu.pipeline_mode<synchronous>, transform_indices = @transform_3, window_bounds = array<i64: 128, 128>}, {pipeline_mode = #tpu.pipeline_mode<synchronous>, transform_indices = @transform_4, window_bounds = array<i64: 1, 128>}, {pipeline_mode = #tpu.pipeline_mode<synchronous>, transform_indices = @transform_5, window_bounds = array<i64: 1, 128>}, {pipeline_mode = #tpu.pipeline_mode<synchronous>, transform_indices = @transform_6, window_bounds = array<i64: 1, 128>}, {pipeline_mode = #tpu.pipeline_mode<synchronous>, transform_indices = @transform_7, window_bounds = array<i64: 128, 128>}, {pipeline_mode = #tpu.pipeline_mode<synchronous>, transform_indices = @transform_8, window_bounds = array<i64: 1, 128>}, {pipeline_mode = #tpu.pipeline_mode<synchronous>, transform_indices = @transform_9, window_bounds = array<i64: 1, 128>}, {pipeline_mode = #tpu.pipeline_mode<synchronous>, transform_indices = @transform_10, window_bounds = array<i64: 1, 128>}, {pipeline_mode = #tpu.pipeline_mode<synchronous>, transform_indices = @transform_11, window_bounds = array<i64: 128, 128>}, {pipeline_mode = #tpu.pipeline_mode<synchronous>, transform_indices = @transform_12, window_bounds = array<i64: 1, 128>}, {transform_indices = @transform_13, window_bounds = array<i64: 1, 2, 128>}]} {
    %c0_i32 = arith.constant 0 : i32
    %0 = arith.cmpi eq, %arg1, %c0_i32 : i32
    %1 = arith.extui %0 : i1 to i32
    %c0_i32_0 = arith.constant 0 : i32
    %2 = arith.cmpi ne, %1, %c0_i32_0 : i32
    scf.if %2 {
      %cst_10 = arith.constant 0.000000e+00 : f32
      %13 = vector.broadcast %cst_10 : f32 to vector<2x128xf32>
      %c0_11 = arith.constant 0 : index
      %c0_12 = arith.constant 0 : index
      %14 = vector.load %arg16[%c0_11, %c0_12] : memref<2x128xf32, #tpu.memory_space<vmem>>, vector<2x128xf32>
      tpu.vector_store %arg16[%c0_11, %c0_12], %13 {strides = array<i32>} : memref<2x128xf32, #tpu.memory_space<vmem>>, vector<2x128xf32>,
    } else {
    }
    %c0 = arith.constant 0 : index
    %c0_1 = arith.constant 0 : index
    %3 = vector.load %arg16[%c0, %c0_1] : memref<2x128xf32, #tpu.memory_space<vmem>>, vector<2x128xf32>
    %c0_2 = arith.constant 0 : index
    %c0_3 = arith.constant 0 : index
    %c0_4 = arith.constant 0 : index
    %4 = vector.load %arg2[%c0_2, %c0_3, %c0_4] : memref<1x2x512xbf16, #tpu.memory_space<vmem>>, vector<1x2x512xbf16>
    %5 = vector.shape_cast %4 : vector<1x2x512xbf16> to vector<2x512xbf16>
    %c0_5 = arith.constant 0 : index
    %c0_6 = arith.constant 0 : index
    %6 = vector.load %arg3[%c0_5, %c0_6] : memref<512x128xbf16, #tpu.memory_space<vmem>>, vector<512x128xbf16>
    %cst = arith.constant dense<0.000000e+00> : vector<2x128xf32>
    %7 = tpu.matmul %5, %6, %cst {dimension_numbers = #tpu.dot_dimension_numbers<[1], [0], [0], [1], [0, 0, 1, 1], [], []>} : vector<2x512xbf16>, vector<512x128xbf16>, vector<2x128xf32> -> vector<2x128xf32>
    %8 = arith.addf %3, %7 : vector<2x128xf32>
    %c0_7 = arith.constant 0 : index
    %c0_8 = arith.constant 0 : index
    %9 = vector.load %arg16[%c0_7, %c0_8] : memref<2x128xf32, #tpu.memory_space<vmem>>, vector<2x128xf32>
    tpu.vector_store %arg16[%c0_7, %c0_8], %8 {strides = array<i32>} : memref<2x128xf32, #tpu.memory_space<vmem>>, vector<2x128xf32>,
    %c1_i32 = arith.constant 1 : i32
    %10 = arith.cmpi eq, %arg1, %c1_i32 : i32
    %11 = arith.extui %10 : i1 to i32
    %c0_i32_9 = arith.constant 0 : i32
    %12 = arith.cmpi ne, %11, %c0_i32_9 : i32
    scf.if %12 {
      %c0_10 = arith.constant 0 : index
      %c0_11 = arith.constant 0 : index
      %13 = vector.load %arg16[%c0_10, %c0_11] : memref<2x128xf32, #tpu.memory_space<vmem>>, vector<2x128xf32>
      %c0_12 = arith.constant 0 : index
      %c0_13 = arith.constant 0 : index
      %14 = vector.load %arg4[%c0_12, %c0_13] : memref<1x128xf32, #tpu.memory_space<vmem>>, vector<1x128xf32>
      %15 = vector.broadcast %14 : vector<1x128xf32> to vector<2x128xf32>
      %16 = arith.addf %13, %15 : vector<2x128xf32>
      %c0_14 = arith.constant 0 : index
      %c0_15 = arith.constant 0 : index
      %17 = vector.load %arg5[%c0_14, %c0_15] : memref<128x128xbf16, #tpu.memory_space<vmem>>, vector<128x128xbf16>
      %18 = arith.extf %17 : vector<128x128xbf16> to vector<128x128xf32>
      %cst_16 = arith.constant dense<0.000000e+00> : vector<2x128xf32>
      %19 = tpu.matmul %16, %18, %cst_16 {dimension_numbers = #tpu.dot_dimension_numbers<[1], [0], [0], [1], [0, 0, 1, 1], [], []>} : vector<2x128xf32>, vector<128x128xf32>, vector<2x128xf32> -> vector<2x128xf32>
      %c0_17 = arith.constant 0 : index
      %c0_18 = arith.constant 0 : index
      %20 = vector.load %arg6[%c0_17, %c0_18] : memref<1x128xf32, #tpu.memory_space<vmem>>, vector<1x128xf32>
      %21 = vector.broadcast %20 : vector<1x128xf32> to vector<2x128xf32>
      %22 = arith.addf %19, %21 : vector<2x128xf32>
      %c0_19 = arith.constant 0 : index
      %c0_20 = arith.constant 0 : index
      %23 = vector.load %arg7[%c0_19, %c0_20] : memref<1x128xf32, #tpu.memory_space<vmem>>, vector<1x128xf32>
      %c0_21 = arith.constant 0 : index
      %c0_22 = arith.constant 0 : index
      %24 = vector.load %arg8[%c0_21, %c0_22] : memref<1x128xf32, #tpu.memory_space<vmem>>, vector<1x128xf32>
      %cst_23 = arith.constant dense<0.000000e+00> : vector<128xf32>
      %25 = vector.multi_reduction <add>, %22, %cst_23 [0] : vector<2x128xf32> to vector<128xf32>
      %26 = vector.shape_cast %25 : vector<128xf32> to vector<1x128xf32>
      %cst_24 = arith.constant 2.000000e+00 : f32
      %27 = vector.broadcast %cst_24 : f32 to vector<1x128xf32>
      %28 = arith.divf %26, %27 : vector<1x128xf32>
      %29 = vector.broadcast %28 : vector<1x128xf32> to vector<2x128xf32>
      %30 = arith.subf %22, %29 : vector<2x128xf32>
      %31 = arith.mulf %30, %30 : vector<2x128xf32>
      %cst_25 = arith.constant dense<0.000000e+00> : vector<128xf32>
      %32 = vector.multi_reduction <add>, %31, %cst_25 [0] : vector<2x128xf32> to vector<128xf32>
      %33 = vector.shape_cast %32 : vector<128xf32> to vector<1x128xf32>
      %cst_26 = arith.constant 2.000000e+00 : f32
      %34 = vector.broadcast %cst_26 : f32 to vector<1x128xf32>
      %35 = arith.divf %33, %34 : vector<1x128xf32>
      %cst_27 = arith.constant 9.99999974E-6 : f32
      %36 = vector.broadcast %cst_27 : f32 to vector<1x128xf32>
      %37 = arith.addf %35, %36 : vector<1x128xf32>
      %38 = math.rsqrt %37 : vector<1x128xf32>
      %39 = arith.mulf %23, %38 : vector<1x128xf32>
      %40 = arith.mulf %28, %39 : vector<1x128xf32>
      %41 = arith.subf %24, %40 : vector<1x128xf32>
      %42 = vector.broadcast %39 : vector<1x128xf32> to vector<2x128xf32>
      %43 = arith.mulf %22, %42 : vector<2x128xf32>
      %44 = vector.broadcast %41 : vector<1x128xf32> to vector<2x128xf32>
      %45 = arith.addf %43, %44 : vector<2x128xf32>
      %cst_28 = arith.constant 0.000000e+00 : f32
      %46 = vector.broadcast %cst_28 : f32 to vector<2x128xf32>
      %47 = arith.maximumf %45, %46 : vector<2x128xf32>
      %c0_29 = arith.constant 0 : index
      %c0_30 = arith.constant 0 : index
      %48 = vector.load %arg9[%c0_29, %c0_30] : memref<128x128xbf16, #tpu.memory_space<vmem>>, vector<128x128xbf16>
      %49 = arith.extf %48 : vector<128x128xbf16> to vector<128x128xf32>
      %cst_31 = arith.constant dense<0.000000e+00> : vector<2x128xf32>
      %50 = tpu.matmul %47, %49, %cst_31 {dimension_numbers = #tpu.dot_dimension_numbers<[1], [0], [0], [1], [0, 0, 1, 1], [], []>} : vector<2x128xf32>, vector<128x128xf32>, vector<2x128xf32> -> vector<2x128xf32>
      %c0_32 = arith.constant 0 : index
      %c0_33 = arith.constant 0 : index
      %51 = vector.load %arg10[%c0_32, %c0_33] : memref<1x128xf32, #tpu.memory_space<vmem>>, vector<1x128xf32>
      %52 = vector.broadcast %51 : vector<1x128xf32> to vector<2x128xf32>
      %53 = arith.addf %50, %52 : vector<2x128xf32>
      %c0_34 = arith.constant 0 : index
      %c0_35 = arith.constant 0 : index
      %54 = vector.load %arg11[%c0_34, %c0_35] : memref<1x128xf32, #tpu.memory_space<vmem>>, vector<1x128xf32>
      %c0_36 = arith.constant 0 : index
      %c0_37 = arith.constant 0 : index
      %55 = vector.load %arg12[%c0_36, %c0_37] : memref<1x128xf32, #tpu.memory_space<vmem>>, vector<1x128xf32>
      %cst_38 = arith.constant dense<0.000000e+00> : vector<128xf32>
      %56 = vector.multi_reduction <add>, %53, %cst_38 [0] : vector<2x128xf32> to vector<128xf32>
      %57 = vector.shape_cast %56 : vector<128xf32> to vector<1x128xf32>
      %cst_39 = arith.constant 2.000000e+00 : f32
      %58 = vector.broadcast %cst_39 : f32 to vector<1x128xf32>
      %59 = arith.divf %57, %58 : vector<1x128xf32>
      %60 = vector.broadcast %59 : vector<1x128xf32> to vector<2x128xf32>
      %61 = arith.subf %53, %60 : vector<2x128xf32>
      %62 = arith.mulf %61, %61 : vector<2x128xf32>
      %cst_40 = arith.constant dense<0.000000e+00> : vector<128xf32>
      %63 = vector.multi_reduction <add>, %62, %cst_40 [0] : vector<2x128xf32> to vector<128xf32>
      %64 = vector.shape_cast %63 : vector<128xf32> to vector<1x128xf32>
      %cst_41 = arith.constant 2.000000e+00 : f32
      %65 = vector.broadcast %cst_41 : f32 to vector<1x128xf32>
      %66 = arith.divf %64, %65 : vector<1x128xf32>
      %cst_42 = arith.constant 9.99999974E-6 : f32
      %67 = vector.broadcast %cst_42 : f32 to vector<1x128xf32>
      %68 = arith.addf %66, %67 : vector<1x128xf32>
      %69 = math.rsqrt %68 : vector<1x128xf32>
      %70 = arith.mulf %54, %69 : vector<1x128xf32>
      %71 = arith.mulf %59, %70 : vector<1x128xf32>
      %72 = arith.subf %55, %71 : vector<1x128xf32>
      %73 = vector.broadcast %70 : vector<1x128xf32> to vector<2x128xf32>
      %74 = arith.mulf %53, %73 : vector<2x128xf32>
      %75 = vector.broadcast %72 : vector<1x128xf32> to vector<2x128xf32>
      %76 = arith.addf %74, %75 : vector<2x128xf32>
      %cst_43 = arith.constant 0.000000e+00 : f32
      %77 = vector.broadcast %cst_43 : f32 to vector<2x128xf32>
      %78 = arith.maximumf %76, %77 : vector<2x128xf32>
      %c0_44 = arith.constant 0 : index
      %c0_45 = arith.constant 0 : index
      %79 = vector.load %arg13[%c0_44, %c0_45] : memref<128x128xbf16, #tpu.memory_space<vmem>>, vector<128x128xbf16>
      %80 = arith.extf %79 : vector<128x128xbf16> to vector<128x128xf32>
      %cst_46 = arith.constant dense<0.000000e+00> : vector<2x128xf32>
      %81 = tpu.matmul %78, %80, %cst_46 {dimension_numbers = #tpu.dot_dimension_numbers<[1], [0], [0], [1], [0, 0, 1, 1], [], []>} : vector<2x128xf32>, vector<128x128xf32>, vector<2x128xf32> -> vector<2x128xf32>
      %c0_47 = arith.constant 0 : index
      %c0_48 = arith.constant 0 : index
      %82 = vector.load %arg14[%c0_47, %c0_48] : memref<1x128xf32, #tpu.memory_space<vmem>>, vector<1x128xf32>
      %83 = vector.broadcast %82 : vector<1x128xf32> to vector<2x128xf32>
      %84 = arith.addf %81, %83 : vector<2x128xf32>
      %c0_49 = arith.constant 0 : index
      %c0_50 = arith.constant 0 : index
      %c0_51 = arith.constant 0 : index
      %85 = vector.load %arg15[%c0_49, %c0_50, %c0_51] : memref<1x2x128xf32, #tpu.memory_space<vmem>>, vector<1x2x128xf32>
      %86 = vector.shape_cast %85 : vector<1x2x128xf32> to vector<2x128xf32>
      %87 = vector.shape_cast %84 : vector<2x128xf32> to vector<1x2x128xf32>
      tpu.vector_store %arg15[%c0_49, %c0_50, %c0_51], %87 {strides = array<i32>} : memref<1x2x128xf32, #tpu.memory_space<vmem>>, vector<1x2x128xf32>,
    } else {
    }
    return
  }
  func.func @transform_0(%arg0: i32, %arg1: i32) -> (i32, i32, i32) {
    %c0_i32 = arith.constant 0 : i32
    %c0_i32_0 = arith.constant 0 : i32
    return %arg0, %c0_i32, %arg1 : i32, i32, i32
  }
  func.func @transform_1(%arg0: i32, %arg1: i32) -> (i32, i32) {
    %c0_i32 = arith.constant 0 : i32
    %c0_i32_0 = arith.constant 0 : i32
    return %arg1, %c0_i32 : i32, i32
  }
  func.func @transform_2(%arg0: i32, %arg1: i32) -> (i32, i32) {
    %c0_i32 = arith.constant 0 : i32
    %c0_i32_0 = arith.constant 0 : i32
    %c0_i32_1 = arith.constant 0 : i32
    return %c0_i32, %c0_i32_0 : i32, i32
  }
  func.func @transform_3(%arg0: i32, %arg1: i32) -> (i32, i32) {
    %c0_i32 = arith.constant 0 : i32
    %c0_i32_0 = arith.constant 0 : i32
    %c0_i32_1 = arith.constant 0 : i32
    return %c0_i32, %c0_i32_0 : i32, i32
  }
  func.func @transform_4(%arg0: i32, %arg1: i32) -> (i32, i32) {
    %c0_i32 = arith.constant 0 : i32
    %c0_i32_0 = arith.constant 0 : i32
    %c0_i32_1 = arith.constant 0 : i32
    return %c0_i32, %c0_i32_0 : i32, i32
  }
  func.func @transform_5(%arg0: i32, %arg1: i32) -> (i32, i32) {
    %c0_i32 = arith.constant 0 : i32
    %c0_i32_0 = arith.constant 0 : i32
    %c0_i32_1 = arith.constant 0 : i32
    return %c0_i32, %c0_i32_0 : i32, i32
  }
  func.func @transform_6(%arg0: i32, %arg1: i32) -> (i32, i32) {
    %c0_i32 = arith.constant 0 : i32
    %c0_i32_0 = arith.constant 0 : i32
    %c0_i32_1 = arith.constant 0 : i32
    return %c0_i32, %c0_i32_0 : i32, i32
  }
  func.func @transform_7(%arg0: i32, %arg1: i32) -> (i32, i32) {
    %c0_i32 = arith.constant 0 : i32
    %c0_i32_0 = arith.constant 0 : i32
    %c0_i32_1 = arith.constant 0 : i32
    return %c0_i32, %c0_i32_0 : i32, i32
  }
  func.func @transform_8(%arg0: i32, %arg1: i32) -> (i32, i32) {
    %c0_i32 = arith.constant 0 : i32
    %c0_i32_0 = arith.constant 0 : i32
    %c0_i32_1 = arith.constant 0 : i32
    return %c0_i32, %c0_i32_0 : i32, i32
  }
  func.func @transform_9(%arg0: i32, %arg1: i32) -> (i32, i32) {
    %c0_i32 = arith.constant 0 : i32
    %c0_i32_0 = arith.constant 0 : i32
    %c0_i32_1 = arith.constant 0 : i32
    return %c0_i32, %c0_i32_0 : i32, i32
  }
  func.func @transform_10(%arg0: i32, %arg1: i32) -> (i32, i32) {
    %c0_i32 = arith.constant 0 : i32
    %c0_i32_0 = arith.constant 0 : i32
    %c0_i32_1 = arith.constant 0 : i32
    return %c0_i32, %c0_i32_0 : i32, i32
  }
  func.func @transform_11(%arg0: i32, %arg1: i32) -> (i32, i32) {
    %c0_i32 = arith.constant 0 : i32
    %c0_i32_0 = arith.constant 0 : i32
    %c0_i32_1 = arith.constant 0 : i32
    return %c0_i32, %c0_i32_0 : i32, i32
  }
  func.func @transform_12(%arg0: i32, %arg1: i32) -> (i32, i32) {
    %c0_i32 = arith.constant 0 : i32
    %c0_i32_0 = arith.constant 0 : i32
    %c0_i32_1 = arith.constant 0 : i32
    return %c0_i32, %c0_i32_0 : i32, i32
  }
  func.func @transform_13(%arg0: i32, %arg1: i32) -> (i32, i32, i32) {
    %c0_i32 = arith.constant 0 : i32
    %c0_i32_0 = arith.constant 0 : i32
    %c0_i32_1 = arith.constant 0 : i32
    return %arg0, %c0_i32, %c0_i32_0 : i32, i32, i32
  }
}

</mosaic_0001>

<llo_original>
// kernel: tpu_custom_call.1
$region0: #{tpu_custom_call.1}
  #allocation0 [shape = 'u32[]', space=smem, size = 0x4, offset = 0x4, fixed_abs, tag = 'smem constant byte address 0x4 - core index']
  #allocation1 [shape = 'u32[144,128]{1,0:T(1,128)}', space=vmem, size = 0x12000, scoped, tag = 'internal scratch']
  #allocation2 [shape = 'f32[2,128]{1,0:T(2,128)}', space=vmem, size = 0x400, scoped, tag = 'scratch operand']
  %s0 = inlined_call_operand.hbm [shape: bf16[2,2,1024], index: 0, kind: input, shape index: {}]
  %s1 = inlined_call_operand.hbm [shape: bf16[1024,128], index: 1, kind: input, shape index: {}]
  %s2 = inlined_call_operand.vmem [shape: f32[1,128], index: 2, kind: input, shape index: {}]
  %s3 = inlined_call_operand.hbm [shape: bf16[128,128], index: 3, kind: input, shape index: {}]
  %s4 = inlined_call_operand.vmem [shape: f32[1,128], index: 4, kind: input, shape index: {}]
  %s5 = inlined_call_operand.vmem [shape: f32[1,128], index: 5, kind: input, shape index: {}]
  %s6 = inlined_call_operand.vmem [shape: f32[1,128], index: 6, kind: input, shape index: {}]
  %s7 = inlined_call_operand.hbm [shape: bf16[128,128], index: 7, kind: input, shape index: {}]
  %s8 = inlined_call_operand.vmem [shape: f32[1,128], index: 8, kind: input, shape index: {}]
  %s9 = inlined_call_operand.vmem [shape: f32[1,128], index: 9, kind: input, shape index: {}]
  %s10 = inlined_call_operand.vmem [shape: f32[1,128], index: 10, kind: input, shape index: {}]
  %s11 = inlined_call_operand.hbm [shape: bf16[128,128], index: 11, kind: input, shape index: {}]
  %s12 = inlined_call_operand.vmem [shape: f32[1,128], index: 12, kind: input, shape index: {}]
  %s13 = inlined_call_operand.hbm [shape: f32[2,2,128], index: 13, kind: output, shape index: {}]
  %s14 = sld [smem:[#allocation0]]
  $region113: #{tpu_custom_call.1} parent=0
    _
  %s16 = ssub.s32 1, %s14
  %s17 = scalar_select 0, %s16, %s14
  $region1: #{tpu_custom_call.1} parent=0
    #allocation3 [shape = 'u8[4096]{0}', space=vmem, size = 0x1000, scoped, tag = 'input window, operand 0']
    #allocation4 [shape = 's32[2]{0}', space=sflag, size = 0x8, scoped, tag = 'scoped memory for tpu_custom_call.1']
    #allocation5 [shape = 's32[2]{0}', space=sflag, size = 0x8, scoped, tag = 'scoped memory for tpu_custom_call.1']
    #allocation6 [shape = 'u8[262144]{0}', space=vmem, size = 0x40000, scoped, tag = 'input window, operand 1']
    #allocation7 [shape = 's32[2]{0}', space=sflag, size = 0x8, scoped, tag = 'scoped memory for tpu_custom_call.1']
    #allocation8 [shape = 'u8[32768]{0}', space=vmem, size = 0x8000, scoped, tag = 'input window, operand 3, single buffered']
    #allocation9 [shape = 'u8[32768]{0}', space=vmem, size = 0x8000, scoped, tag = 'input window, operand 7, single buffered']
    #allocation10 [shape = 's32[1]{0}', space=sflag, size = 0x4, scoped, tag = 'scoped memory for tpu_custom_call.1']
    #allocation11 [shape = 'u8[32768]{0}', space=vmem, size = 0x8000, scoped, tag = 'input window, operand 11, single buffered']
    #allocation12 [shape = 'u8[2048]{0}', space=vmem, size = 0x800, scoped, tag = 'output window, operand 0']
    %18 = vsyncpa [#allocation4], 0
    %s19 = scalar_lea.sflag [#allocation4], 1
    %20 = vsyncpa %s19, 0
    %21 = vsyncpa [#allocation7], 0
    %s22 = scalar_lea.sflag [#allocation7], 1
    %23 = vsyncpa %s22, 0
    %24 = vsyncpa [#allocation10], 0
    %25 = vsyncpa [#allocation5], 0
    %s26 = scalar_lea.sflag [#allocation5], 1
    %27 = vsyncpa %s26, 0
    loop: start=0, step=1, limit=6
    $region2: #{tpu_custom_call.1} parent=1 // loop_pre_header
      _
    $region3: #{tpu_custom_call.1} parent=1 // loop_header
      %s29 = sphi 0, %s33
      %p30 = scmp.ge.s32.totalorder %s29, 6
      %s36 = sphi 0, %s48
      %s37 = sphi 0, %s44
      %s38 = sphi 0, %s36
      %s39 = sphi 0, %s37
      %s40 = sphi 0, %s38
      %s41 = sphi 0, %s39
      %s53 = sphi 0, %s55
      %s56 = sphi 0, %s53
      %s57 = sphi 0, %s56
      %s73 = sphi 0, %s57
      %s79 = sphi 0, %s81
      %s82 = sphi 0, %s79
      %s83 = sphi 0, %s82
      %s99 = sphi 0, %s83
      %s103 = sphi 0, %s103
      %s105 = sphi 0, %s103
      %s106 = sphi 0, %s105
      %s120 = sphi 0, %s106
      %s124 = sphi 0, %s124
      %s126 = sphi 0, %s124
      %s127 = sphi 0, %s126
      %s141 = sphi 0, %s127
      %s145 = sphi 0, %s145
      %s147 = sphi 0, %s145
      %s148 = sphi 0, %s147
      %s162 = sphi 0, %s148
      %s166 = sphi 0, %s166
      %s168 = sphi 0, %s166
      %s169 = sphi 0, %s168
      %s183 = sphi 0, %s169
      %s187 = sphi 0, %s187
      %s189 = sphi 0, %s187
      %s190 = sphi 0, %s189
      %s204 = sphi 0, %s190
      %s208 = sphi 0, %s208
      %s210 = sphi 0, %s208
      %s211 = sphi 0, %s210
      %s225 = sphi 0, %s211
      %s229 = sphi 0, %s229
      %s231 = sphi 0, %s229
      %s232 = sphi 0, %s231
      %s246 = sphi 0, %s232
      %s250 = sphi 0, %s250
      %s252 = sphi 0, %s250
      %s253 = sphi 0, %s252
      %s267 = sphi 0, %s253
      %s271 = sphi 0, %s271
      %s273 = sphi 0, %s271
      %s274 = sphi 0, %s273
      %s288 = sphi 0, %s274
      %s292 = sphi 0, %s292
      %s294 = sphi 0, %s292
      %s295 = sphi 0, %s294
      %s309 = sphi 0, %s295
      %s313 = sphi 0, %s313
      %s315 = sphi 0, %s313
      %s316 = sphi 0, %s315
      %s330 = sphi 0, %s316
      %s336 = sphi 0, %s338
      %s339 = sphi 0, %s336
      %s340 = sphi 0, %s339
      %s356 = sphi 0, %s340
    $region4: #{tpu_custom_call.1} parent=1 // loop_header_branch
      %32 = sbr.rel (%p30) target = $region8
    $region5: #{tpu_custom_call.1} parent=1 // loop_body
      %s34 = ssub.s32 %s29, 1
      %s35 = ssub.s32 %s29, 2
      %s42 = sadd.s32 1, %s37
      %p43 = scmp.ge.s32.totalorder %s42, 2
      %s44 = scalar_select %p43, 0, %s42
      %s45 = sadd.s32 1, %s36
      %s46 = scalar_select %p43, %s45, %s36
      %p47 = scmp.ge.s32.totalorder %s46, 2
      %s48 = scalar_select %p47, 0, %s46
      %s49 = ssub.s32 %s36, %s48
      %s50 = ssub.s32 %s37, %s44
      %s51 = sor.u32 %s49, %s50
      %p52 = scmp.eq.s32.totalorder %s51, 0
      %s54 = sadd.s32 %s53, 1
      %s55 = scalar_select %p52, %s53, %s54
      %p58 = pneg %p52
      %p59 = scmp.eq.s32.totalorder %s29, 3
      %p60 = por %p58, %p59
      %p61 = scmp.ne.s32.totalorder %s53, %s56
      %p62 = scmp.eq.s32.totalorder %s29, 0
      %p63 = por %p61, %p62
      %p64 = scmp.ne.s32.totalorder %s53, %s56
      %p65 = scmp.eq.s32.totalorder %s34, 3
      %p66 = por %p64, %p65
      %p67 = scmp.ne.s32.totalorder %s56, %s57
      %p68 = scmp.eq.s32.totalorder %s34, 0
      %p69 = por %p67, %p68
      %p70 = scmp.ne.s32.totalorder %s56, %s57
      %p71 = scmp.eq.s32.totalorder %s35, 3
      %p72 = por %p70, %p71
      %p74 = scmp.ne.s32.totalorder %s57, %s73
      %p75 = scmp.eq.s32.totalorder %s35, 0
      %p76 = por %p74, %p75
      %s77 = ssub.s32 %s37, %s44
      %p78 = scmp.eq.s32.totalorder %s77, 0
      %s80 = sadd.s32 %s79, 1
      %s81 = scalar_select %p78, %s79, %s80
      %p84 = pneg %p78
      %p85 = scmp.eq.s32.totalorder %s29, 3
      %p86 = por %p84, %p85
      %p87 = scmp.ne.s32.totalorder %s79, %s82
      %p88 = scmp.eq.s32.totalorder %s29, 0
      %p89 = por %p87, %p88
      %p90 = scmp.ne.s32.totalorder %s79, %s82
      %p91 = scmp.eq.s32.totalorder %s34, 3
      %p92 = por %p90, %p91
      %p93 = scmp.ne.s32.totalorder %s82, %s83
      %p94 = scmp.eq.s32.totalorder %s34, 0
      %p95 = por %p93, %p94
      %p96 = scmp.ne.s32.totalorder %s82, %s83
      %p97 = scmp.eq.s32.totalorder %s35, 3
      %p98 = por %p96, %p97
      %p100 = scmp.ne.s32.totalorder %s83, %s99
      %p101 = scmp.eq.s32.totalorder %s35, 0
      %p102 = por %p100, %p101
      %s104 = sadd.s32 %s103, 1
      %p107 = scmp.eq.s32.totalorder %s29, 3
      %p108 = scmp.ne.s32.totalorder %s103, %s105
      %p109 = scmp.eq.s32.totalorder %s29, 0
      %p110 = por %p108, %p109
      %p111 = scmp.ne.s32.totalorder %s103, %s105
      %p112 = scmp.eq.s32.totalorder %s34, 3
      %p113 = por %p111, %p112
      %p114 = scmp.ne.s32.totalorder %s105, %s106
      %p115 = scmp.eq.s32.totalorder %s34, 0
      %p116 = por %p114, %p115
      %p117 = scmp.ne.s32.totalorder %s105, %s106
      %p118 = scmp.eq.s32.totalorder %s35, 3
      %p119 = por %p117, %p118
      %p121 = scmp.ne.s32.totalorder %s106, %s120
      %p122 = scmp.eq.s32.totalorder %s35, 0
      %p123 = por %p121, %p122
      %s125 = sadd.s32 %s124, 1
      %p128 = scmp.eq.s32.totalorder %s29, 3
      %p129 = scmp.ne.s32.totalorder %s124, %s126
      %p130 = scmp.eq.s32.totalorder %s29, 0
      %p131 = por %p129, %p130
      %p132 = scmp.ne.s32.totalorder %s124, %s126
      %p133 = scmp.eq.s32.totalorder %s34, 3
      %p134 = por %p132, %p133
      %p135 = scmp.ne.s32.totalorder %s126, %s127
      %p136 = scmp.eq.s32.totalorder %s34, 0
      %p137 = por %p135, %p136
      %p138 = scmp.ne.s32.totalorder %s126, %s127
      %p139 = scmp.eq.s32.totalorder %s35, 3
      %p140 = por %p138, %p139
      %p142 = scmp.ne.s32.totalorder %s127, %s141
      %p143 = scmp.eq.s32.totalorder %s35, 0
      %p144 = por %p142, %p143
      %s146 = sadd.s32 %s145, 1
      %p149 = scmp.eq.s32.totalorder %s29, 3
      %p150 = scmp.ne.s32.totalorder %s145, %s147
      %p151 = scmp.eq.s32.totalorder %s29, 0
      %p152 = por %p150, %p151
      %p153 = scmp.ne.s32.totalorder %s145, %s147
      %p154 = scmp.eq.s32.totalorder %s34, 3
      %p155 = por %p153, %p154
      %p156 = scmp.ne.s32.totalorder %s147, %s148
      %p157 = scmp.eq.s32.totalorder %s34, 0
      %p158 = por %p156, %p157
      %p159 = scmp.ne.s32.totalorder %s147, %s148
      %p160 = scmp.eq.s32.totalorder %s35, 3
      %p161 = por %p159, %p160
      %p163 = scmp.ne.s32.totalorder %s148, %s162
      %p164 = scmp.eq.s32.totalorder %s35, 0
      %p165 = por %p163, %p164
      %s167 = sadd.s32 %s166, 1
      %p170 = scmp.eq.s32.totalorder %s29, 3
      %p171 = scmp.ne.s32.totalorder %s166, %s168
      %p172 = scmp.eq.s32.totalorder %s29, 0
      %p173 = por %p171, %p172
      %p174 = scmp.ne.s32.totalorder %s166, %s168
      %p175 = scmp.eq.s32.totalorder %s34, 3
      %p176 = por %p174, %p175
      %p177 = scmp.ne.s32.totalorder %s168, %s169
      %p178 = scmp.eq.s32.totalorder %s34, 0
      %p179 = por %p177, %p178
      %p180 = scmp.ne.s32.totalorder %s168, %s169
      %p181 = scmp.eq.s32.totalorder %s35, 3
      %p182 = por %p180, %p181
      %p184 = scmp.ne.s32.totalorder %s169, %s183
      %p185 = scmp.eq.s32.totalorder %s35, 0
      %p186 = por %p184, %p185
      %s188 = sadd.s32 %s187, 1
      %p191 = scmp.eq.s32.totalorder %s29, 3
      %p192 = scmp.ne.s32.totalorder %s187, %s189
      %p193 = scmp.eq.s32.totalorder %s29, 0
      %p194 = por %p192, %p193
      %p195 = scmp.ne.s32.totalorder %s187, %s189
      %p196 = scmp.eq.s32.totalorder %s34, 3
      %p197 = por %p195, %p196
      %p198 = scmp.ne.s32.totalorder %s189, %s190
      %p199 = scmp.eq.s32.totalorder %s34, 0
      %p200 = por %p198, %p199
      %p201 = scmp.ne.s32.totalorder %s189, %s190
      %p202 = scmp.eq.s32.totalorder %s35, 3
      %p203 = por %p201, %p202
      %p205 = scmp.ne.s32.totalorder %s190, %s204
      %p206 = scmp.eq.s32.totalorder %s35, 0
      %p207 = por %p205, %p206
      %s209 = sadd.s32 %s208, 1
      %p212 = scmp.eq.s32.totalorder %s29, 3
      %p213 = scmp.ne.s32.totalorder %s208, %s210
      %p214 = scmp.eq.s32.totalorder %s29, 0
      %p215 = por %p213, %p214
      %p216 = scmp.ne.s32.totalorder %s208, %s210
      %p217 = scmp.eq.s32.totalorder %s34, 3
      %p218 = por %p216, %p217
      %p219 = scmp.ne.s32.totalorder %s210, %s211
      %p220 = scmp.eq.s32.totalorder %s34, 0
      %p221 = por %p219, %p220
      %p222 = scmp.ne.s32.totalorder %s210, %s211
      %p223 = scmp.eq.s32.totalorder %s35, 3
      %p224 = por %p222, %p223
      %p226 = scmp.ne.s32.totalorder %s211, %s225
      %p227 = scmp.eq.s32.totalorder %s35, 0
      %p228 = por %p226, %p227
      %s230 = sadd.s32 %s229, 1
      %p233 = scmp.eq.s32.totalorder %s29, 3
      %p234 = scmp.ne.s32.totalorder %s229, %s231
      %p235 = scmp.eq.s32.totalorder %s29, 0
      %p236 = por %p234, %p235
      %p237 = scmp.ne.s32.totalorder %s229, %s231
      %p238 = scmp.eq.s32.totalorder %s34, 3
      %p239 = por %p237, %p238
      %p240 = scmp.ne.s32.totalorder %s231, %s232
      %p241 = scmp.eq.s32.totalorder %s34, 0
      %p242 = por %p240, %p241
      %p243 = scmp.ne.s32.totalorder %s231, %s232
      %p244 = scmp.eq.s32.totalorder %s35, 3
      %p245 = por %p243, %p244
      %p247 = scmp.ne.s32.totalorder %s232, %s246
      %p248 = scmp.eq.s32.totalorder %s35, 0
      %p249 = por %p247, %p248
      %s251 = sadd.s32 %s250, 1
      %p254 = scmp.eq.s32.totalorder %s29, 3
      %p255 = scmp.ne.s32.totalorder %s250, %s252
      %p256 = scmp.eq.s32.totalorder %s29, 0
      %p257 = por %p255, %p256
      %p258 = scmp.ne.s32.totalorder %s250, %s252
      %p259 = scmp.eq.s32.totalorder %s34, 3
      %p260 = por %p258, %p259
      %p261 = scmp.ne.s32.totalorder %s252, %s253
      %p262 = scmp.eq.s32.totalorder %s34, 0
      %p263 = por %p261, %p262
      %p264 = scmp.ne.s32.totalorder %s252, %s253
      %p265 = scmp.eq.s32.totalorder %s35, 3
      %p266 = por %p264, %p265
      %p268 = scmp.ne.s32.totalorder %s253, %s267
      %p269 = scmp.eq.s32.totalorder %s35, 0
      %p270 = por %p268, %p269
      %s272 = sadd.s32 %s271, 1
      %p275 = scmp.eq.s32.totalorder %s29, 3
      %p276 = scmp.ne.s32.totalorder %s271, %s273
      %p277 = scmp.eq.s32.totalorder %s29, 0
      %p278 = por %p276, %p277
      %p279 = scmp.ne.s32.totalorder %s271, %s273
      %p280 = scmp.eq.s32.totalorder %s34, 3
      %p281 = por %p279, %p280
      %p282 = scmp.ne.s32.totalorder %s273, %s274
      %p283 = scmp.eq.s32.totalorder %s34, 0
      %p284 = por %p282, %p283
      %p285 = scmp.ne.s32.totalorder %s273, %s274
      %p286 = scmp.eq.s32.totalorder %s35, 3
      %p287 = por %p285, %p286
      %p289 = scmp.ne.s32.totalorder %s274, %s288
      %p290 = scmp.eq.s32.totalorder %s35, 0
      %p291 = por %p289, %p290
      %s293 = sadd.s32 %s292, 1
      %p296 = scmp.eq.s32.totalorder %s29, 3
      %p297 = scmp.ne.s32.totalorder %s292, %s294
      %p298 = scmp.eq.s32.totalorder %s29, 0
      %p299 = por %p297, %p298
      %p300 = scmp.ne.s32.totalorder %s292, %s294
      %p301 = scmp.eq.s32.totalorder %s34, 3
      %p302 = por %p300, %p301
      %p303 = scmp.ne.s32.totalorder %s294, %s295
      %p304 = scmp.eq.s32.totalorder %s34, 0
      %p305 = por %p303, %p304
      %p306 = scmp.ne.s32.totalorder %s294, %s295
      %p307 = scmp.eq.s32.totalorder %s35, 3
      %p308 = por %p306, %p307
      %p310 = scmp.ne.s32.totalorder %s295, %s309
      %p311 = scmp.eq.s32.totalorder %s35, 0
      %p312 = por %p310, %p311
      %s314 = sadd.s32 %s313, 1
      %p317 = scmp.eq.s32.totalorder %s29, 3
      %p318 = scmp.ne.s32.totalorder %s313, %s315
      %p319 = scmp.eq.s32.totalorder %s29, 0
      %p320 = por %p318, %p319
      %p321 = scmp.ne.s32.totalorder %s313, %s315
      %p322 = scmp.eq.s32.totalorder %s34, 3
      %p323 = por %p321, %p322
      %p324 = scmp.ne.s32.totalorder %s315, %s316
      %p325 = scmp.eq.s32.totalorder %s34, 0
      %p326 = por %p324, %p325
      %p327 = scmp.ne.s32.totalorder %s315, %s316
      %p328 = scmp.eq.s32.totalorder %s35, 3
      %p329 = por %p327, %p328
      %p331 = scmp.ne.s32.totalorder %s316, %s330
      %p332 = scmp.eq.s32.totalorder %s35, 0
      %p333 = por %p331, %p332
      %s334 = ssub.s32 %s36, %s48
      %p335 = scmp.eq.s32.totalorder %s334, 0
      %s337 = sadd.s32 %s336, 1
      %s338 = scalar_select %p335, %s336, %s337
      %p341 = pneg %p335
      %p342 = scmp.eq.s32.totalorder %s29, 3
      %p343 = por %p341, %p342
      %p344 = scmp.ne.s32.totalorder %s336, %s339
      %p345 = scmp.eq.s32.totalorder %s29, 0
      %p346 = por %p344, %p345
      %p347 = scmp.ne.s32.totalorder %s336, %s339
      %p348 = scmp.eq.s32.totalorder %s34, 3
      %p349 = por %p347, %p348
      %p350 = scmp.ne.s32.totalorder %s339, %s340
      %p351 = scmp.eq.s32.totalorder %s34, 0
      %p352 = por %p350, %p351
      %p353 = scmp.ne.s32.totalorder %s339, %s340
      %p354 = scmp.eq.s32.totalorder %s35, 3
      %p355 = por %p353, %p354
      %p357 = scmp.ne.s32.totalorder %s340, %s356
      %p358 = scmp.eq.s32.totalorder %s35, 0
      %p359 = por %p357, %p358
      %p360 = scmp.le.s32.totalorder 1, %s29
      %p361 = scmp.lt.s32.totalorder %s29, 5
      %p362 = pnand %p360, %p361
      %p363 = pneg %p362
      // Predicated region
      $region9: #{tpu_custom_call.1} parent=5 // pred_check
        _
      $region10: #{tpu_custom_call.1} parent=5 // pred_check_branch
        %365 = sbr.rel (%p362) target = $region12
      $region11: #{tpu_custom_call.1} parent=5 // pred_region
        %s366 = ssub.s32 %s29, 1
        // Predicated region
        $region13: #{tpu_custom_call.1} parent=11 // pred_check
          %p367 = pneg %p116
        $region14: #{tpu_custom_call.1} parent=11 // pred_check_branch
          %369 = sbr.rel (%p367) target = $region16
        $region15: #{tpu_custom_call.1} parent=11 // pred_region
          _
        $region16: #{tpu_custom_call.1} parent=11 // pred_fallthru
          _
        // Predicated region
        $region17: #{tpu_custom_call.1} parent=11 // pred_check
          %p370 = pneg %p137
        $region18: #{tpu_custom_call.1} parent=11 // pred_check_branch
          %372 = sbr.rel (%p370) target = $region20
        $region19: #{tpu_custom_call.1} parent=11 // pred_region
          %s374 = ssub.s32 1024, 1024
          %375 = vsyncadd [#allocation7], %s374
          %s376 = sshll.u32 [#allocation8], 4
          %s377 = int_to_ptr.vmem [resolvable:$true] %s376
          %382 = dma.hbm_to_vmem [thread:$0]  %s3, 1024, %s377, [#allocation7], 64, 64, 4
        $region20: #{tpu_custom_call.1} parent=11 // pred_fallthru
          _
        // Predicated region
        $region21: #{tpu_custom_call.1} parent=11 // pred_check
          %p383 = pneg %p158
        $region22: #{tpu_custom_call.1} parent=11 // pred_check_branch
          %385 = sbr.rel (%p383) target = $region24
        $region23: #{tpu_custom_call.1} parent=11 // pred_region
          _
        $region24: #{tpu_custom_call.1} parent=11 // pred_fallthru
          _
        // Predicated region
        $region25: #{tpu_custom_call.1} parent=11 // pred_check
          %p386 = pneg %p179
        $region26: #{tpu_custom_call.1} parent=11 // pred_check_branch
          %388 = sbr.rel (%p386) target = $region28
        $region27: #{tpu_custom_call.1} parent=11 // pred_region
          _
        $region28: #{tpu_custom_call.1} parent=11 // pred_fallthru
          _
        // Predicated region
        $region29: #{tpu_custom_call.1} parent=11 // pred_check
          %p389 = pneg %p200
        $region30: #{tpu_custom_call.1} parent=11 // pred_check_branch
          %391 = sbr.rel (%p389) target = $region32
        $region31: #{tpu_custom_call.1} parent=11 // pred_region
          _
        $region32: #{tpu_custom_call.1} parent=11 // pred_fallthru
          _
        // Predicated region
        $region33: #{tpu_custom_call.1} parent=11 // pred_check
          %p392 = pneg %p221
        $region34: #{tpu_custom_call.1} parent=11 // pred_check_branch
          %394 = sbr.rel (%p392) target = $region36
        $region35: #{tpu_custom_call.1} parent=11 // pred_region
          %s396 = ssub.s32 1024, 1024
          %397 = vsyncadd [#allocation10], %s396
          %s398 = sshll.u32 [#allocation9], 4
          %s399 = int_to_ptr.vmem [resolvable:$true] %s398
          %404 = dma.hbm_to_vmem [thread:$0]  %s7, 1024, %s399, [#allocation10], 64, 64, 4
        $region36: #{tpu_custom_call.1} parent=11 // pred_fallthru
          _
        // Predicated region
        $region37: #{tpu_custom_call.1} parent=11 // pred_check
          %p405 = pneg %p242
        $region38: #{tpu_custom_call.1} parent=11 // pred_check_branch
          %407 = sbr.rel (%p405) target = $region40
        $region39: #{tpu_custom_call.1} parent=11 // pred_region
          _
        $region40: #{tpu_custom_call.1} parent=11 // pred_fallthru
          _
        // Predicated region
        $region41: #{tpu_custom_call.1} parent=11 // pred_check
          %p408 = pneg %p263
        $region42: #{tpu_custom_call.1} parent=11 // pred_check_branch
          %410 = sbr.rel (%p408) target = $region44
        $region43: #{tpu_custom_call.1} parent=11 // pred_region
          _
        $region44: #{tpu_custom_call.1} parent=11 // pred_fallthru
          _
        // Predicated region
        $region45: #{tpu_custom_call.1} parent=11 // pred_check
          %p411 = pneg %p284
        $region46: #{tpu_custom_call.1} parent=11 // pred_check_branch
          %413 = sbr.rel (%p411) target = $region48
        $region47: #{tpu_custom_call.1} parent=11 // pred_region
          _
        $region48: #{tpu_custom_call.1} parent=11 // pred_fallthru
          _
        // Predicated region
        $region49: #{tpu_custom_call.1} parent=11 // pred_check
          %p414 = pneg %p305
        $region50: #{tpu_custom_call.1} parent=11 // pred_check_branch
          %416 = sbr.rel (%p414) target = $region52
        $region51: #{tpu_custom_call.1} parent=11 // pred_region
          %s418 = ssub.s32 1024, 1024
          %419 = vsyncadd [#allocation10], %s418
          %s420 = sshll.u32 [#allocation11], 4
          %s421 = int_to_ptr.vmem [resolvable:$true] %s420
          %426 = dma.hbm_to_vmem [thread:$0]  %s11, 1024, %s421, [#allocation10], 64, 64, 4
        $region52: #{tpu_custom_call.1} parent=11 // pred_fallthru
          _
        // Predicated region
        $region53: #{tpu_custom_call.1} parent=11 // pred_check
          %p427 = pneg %p326
        $region54: #{tpu_custom_call.1} parent=11 // pred_check_branch
          %429 = sbr.rel (%p427) target = $region56
        $region55: #{tpu_custom_call.1} parent=11 // pred_region
          _
        $region56: #{tpu_custom_call.1} parent=11 // pred_fallthru
          _
      $region12: #{tpu_custom_call.1} parent=5 // pred_fallthru
        _
      %p430 = scmp.lt.s32.totalorder %s29, 4
      // Predicated region
      $region57: #{tpu_custom_call.1} parent=5 // pred_check
        %p431 = pneg %p430
      $region58: #{tpu_custom_call.1} parent=5 // pred_check_branch
        %433 = sbr.rel (%p431) target = $region60
      $region59: #{tpu_custom_call.1} parent=5 // pred_region
        // Predicated region
        $region61: #{tpu_custom_call.1} parent=59 // pred_check
          %p434 = pneg %p63
        $region62: #{tpu_custom_call.1} parent=59 // pred_check_branch
          %436 = sbr.rel (%p434) target = $region64
        $region63: #{tpu_custom_call.1} parent=59 // pred_region
          %s437 = sand.u32 %s53, 1
          %s438 = scalar_lea.sflag [#allocation4], %s437
          %s439 = sand.u32 %s53, 1
          %s440 = smul.addr %s439, 4
          %s441 = scalar_lea.vmem [#allocation3], %s440
          %s442 = smul.u32 4, %s37
          %s444 = ssub.s32 64, 64
          %445 = vsyncadd %s438, %s444
          %s446 = smul.addr %s36, 8
          %s447 = sadd.s32 %s442, %s446
          %s448 = smul.addr %s447, 16
          %s449 = scalar_lea.hbm %s0, %s448
          %s451 = sshll.u32 %s441, 4
          %s452 = int_to_ptr.vmem [resolvable:$true] %s451
          %454 = dma.hbm_to_vmem [thread:$0]  %s449, 64, %s452, %s438
        $region64: #{tpu_custom_call.1} parent=59 // pred_fallthru
          _
        // Predicated region
        $region65: #{tpu_custom_call.1} parent=59 // pred_check
          %p455 = pneg %p89
        $region66: #{tpu_custom_call.1} parent=59 // pred_check_branch
          %457 = sbr.rel (%p455) target = $region68
        $region67: #{tpu_custom_call.1} parent=59 // pred_region
          %s458 = sand.u32 %s29, 1
          %s459 = scalar_lea.sflag [#allocation7], %s458
          %s460 = sand.u32 %s79, 1
          %s461 = smul.addr %s460, 256
          %s462 = scalar_lea.vmem [#allocation6], %s461
          %s463 = smul.u32 64, %s37
          %s465 = ssub.s32 4096, 4096
          %466 = vsyncadd %s459, %s465
          %s467 = smul.addr %s463, 64
          %s468 = scalar_lea.hbm %s1, %s467
          %s469 = sshll.u32 %s462, 4
          %s470 = int_to_ptr.vmem [resolvable:$true] %s469
          %475 = dma.hbm_to_vmem [thread:$0]  %s468, 4096, %s470, %s459, 64, 64, 4
        $region68: #{tpu_custom_call.1} parent=59 // pred_fallthru
          _
      $region60: #{tpu_custom_call.1} parent=5 // pred_fallthru
        _
      %p476 = scmp.le.s32.totalorder 1, %s29
      %p477 = scmp.lt.s32.totalorder %s29, 5
      %p478 = pnand %p476, %p477
      %p479 = pneg %p478
      // Predicated region
      $region69: #{tpu_custom_call.1} parent=5 // pred_check
        _
      $region70: #{tpu_custom_call.1} parent=5 // pred_check_branch
        %481 = sbr.rel (%p478) target = $region72
      $region71: #{tpu_custom_call.1} parent=5 // pred_region
        %s482 = ssub.s32 %s29, 1
        %s483 = sand.u32 %s56, 1
        %s484 = scalar_lea.sflag [#allocation4], %s483
        %s485 = sand.u32 %s56, 1
        %s486 = smul.addr %s485, 4
        %s487 = scalar_lea.vmem [#allocation3], %s486
        // Predicated region
        $region73: #{tpu_custom_call.1} parent=71 // pred_check
          %p488 = pneg %p69
        $region74: #{tpu_custom_call.1} parent=71 // pred_check_branch
          %490 = sbr.rel (%p488) target = $region76
        $region75: #{tpu_custom_call.1} parent=71 // pred_region
          %491 = dma.done %s484, 64
        $region76: #{tpu_custom_call.1} parent=71 // pred_fallthru
          _
        %s492 = sand.u32 %s34, 1
        %s493 = scalar_lea.sflag [#allocation7], %s492
        %s494 = sand.u32 %s82, 1
        %s495 = smul.addr %s494, 256
        %s496 = scalar_lea.vmem [#allocation6], %s495
        // Predicated region
        $region77: #{tpu_custom_call.1} parent=71 // pred_check
          %p497 = pneg %p95
        $region78: #{tpu_custom_call.1} parent=71 // pred_check_branch
          %499 = sbr.rel (%p497) target = $region80
        $region79: #{tpu_custom_call.1} parent=71 // pred_region
          %500 = dma.done %s493, 4096
        $region80: #{tpu_custom_call.1} parent=71 // pred_fallthru
          _
        // Predicated region
        $region81: #{tpu_custom_call.1} parent=71 // pred_check
          %p501 = pneg %p137
        $region82: #{tpu_custom_call.1} parent=71 // pred_check_branch
          %503 = sbr.rel (%p501) target = $region84
        $region83: #{tpu_custom_call.1} parent=71 // pred_region
          %504 = dma.done [#allocation7], 1024
        $region84: #{tpu_custom_call.1} parent=71 // pred_fallthru
          _
        // Predicated region
        $region85: #{tpu_custom_call.1} parent=71 // pred_check
          %p505 = pneg %p221
        $region86: #{tpu_custom_call.1} parent=71 // pred_check_branch
          %507 = sbr.rel (%p505) target = $region88
        $region87: #{tpu_custom_call.1} parent=71 // pred_region
          %508 = dma.done [#allocation10], 1024
        $region88: #{tpu_custom_call.1} parent=71 // pred_fallthru
          _
        // Predicated region
        $region89: #{tpu_custom_call.1} parent=71 // pred_check
          %p509 = pneg %p305
        $region90: #{tpu_custom_call.1} parent=71 // pred_check_branch
          %511 = sbr.rel (%p509) target = $region92
        $region91: #{tpu_custom_call.1} parent=71 // pred_region
          %512 = dma.done [#allocation10], 1024
        $region92: #{tpu_custom_call.1} parent=71 // pred_fallthru
          _
        %s513 = sand.u32 %s56, 1
        %s514 = scalar_lea.sflag [#allocation4], %s513
        %s515 = sand.u32 %s56, 1
        %s516 = smul.addr %s515, 4
        %s517 = scalar_lea.vmem [#allocation3], %s516
        %p518 = pneg %p69
        %p519 = pneg %p66
        %s520 = sand.u32 %s34, 1
        %s521 = scalar_lea.sflag [#allocation7], %s520
        %s522 = sand.u32 %s82, 1
        %s523 = smul.addr %s522, 256
        %s524 = scalar_lea.vmem [#allocation6], %s523
        %p525 = pneg %p95
        %p526 = pneg %p92
        %p527 = pneg %p116
        %p528 = pneg %p113
        %p529 = pneg %p137
        %p530 = pneg %p134
        %p531 = pneg %p158
        %p532 = pneg %p155
        %p533 = pneg %p179
        %p534 = pneg %p176
        %p535 = pneg %p200
        %p536 = pneg %p197
        %p537 = pneg %p221
        %p538 = pneg %p218
        %p539 = pneg %p242
        %p540 = pneg %p239
        %p541 = pneg %p263
        %p542 = pneg %p260
        %p543 = pneg %p284
        %p544 = pneg %p281
        %p545 = pneg %p305
        %p546 = pneg %p302
        %p547 = pneg %p326
        %p548 = pneg %p323
        %p549 = pneg %p352
        %p550 = pneg %p349
        %s551 = sand.u32 %s339, 1
        %s552 = scalar_lea.sflag [#allocation5], %s551
        %s553 = sand.u32 %s339, 1
        %s554 = smul.addr %s553, 2
        %s555 = scalar_lea.vmem [#allocation12], %s554
        %s556 = smul.u32 4, %s39
        %s557 = smul.u32 64, %s39
        %p559 = scmp.eq.s32.totalorder %s39, 0
        // Predicated region
        $region93: #{tpu_custom_call.1} parent=71 // pred_check
          %p560 = pneg %p559
        $region94: #{tpu_custom_call.1} parent=71 // pred_check_branch
          %562 = sbr.rel (%p560) target = $region96
        $region95: #{tpu_custom_call.1} parent=71 // pred_region
          %563 = vst [vmem:[#allocation2] sm:$0x3] 0.0
        $region96: #{tpu_custom_call.1} parent=71 // pred_fallthru
          _
        %v564 = vld [vmem:[#allocation2] sm:$0x3]
        %v565 = vld [vmem:[%s487] sm:$0xf]
        %v566 = vld [vmem:[%s496] sm:$0xf]
        %v567 = vld [vmem:[%s496 + $0x4] sm:$0xf]
        %v568 = vld [vmem:[%s496 + $0x8] sm:$0xf]
        %v569 = vld [vmem:[%s496 + $0xc] sm:$0xf]
        %v570 = vld [vmem:[%s496 + $0x10] sm:$0xf]
        %v571 = vld [vmem:[%s496 + $0x14] sm:$0xf]
        %v572 = vld [vmem:[%s496 + $0x18] sm:$0xf]
        %v573 = vld [vmem:[%s496 + $0x1c] sm:$0xf]
        %v574 = vld [vmem:[%s496 + $0x20] sm:$0xf]
        %v575 = vld [vmem:[%s496 + $0x24] sm:$0xf]
        %v576 = vld [vmem:[%s496 + $0x28] sm:$0xf]
        %v577 = vld [vmem:[%s496 + $0x2c] sm:$0xf]
        %v578 = vld [vmem:[%s496 + $0x30] sm:$0xf]
        %v579 = vld [vmem:[%s496 + $0x34] sm:$0xf]
        %v580 = vld [vmem:[%s496 + $0x38] sm:$0xf]
        %v581 = vld [vmem:[%s496 + $0x3c] sm:$0xf]
        %v582 = vld [vmem:[%s496 + $0x40] sm:$0xf]
        %v583 = vld [vmem:[%s496 + $0x44] sm:$0xf]
        %v584 = vld [vmem:[%s496 + $0x48] sm:$0xf]
        %v585 = vld [vmem:[%s496 + $0x4c] sm:$0xf]
        %v586 = vld [vmem:[%s496 + $0x50] sm:$0xf]
        %v587 = vld [vmem:[%s496 + $0x54] sm:$0xf]
        %v588 = vld [vmem:[%s496 + $0x58] sm:$0xf]
        %v589 = vld [vmem:[%s496 + $0x5c] sm:$0xf]
        %v590 = vld [vmem:[%s496 + $0x60] sm:$0xf]
        %v591 = vld [vmem:[%s496 + $0x64] sm:$0xf]
        %v592 = vld [vmem:[%s496 + $0x68] sm:$0xf]
        %v593 = vld [vmem:[%s496 + $0x6c] sm:$0xf]
        %v594 = vld [vmem:[%s496 + $0x70] sm:$0xf]
        %v595 = vld [vmem:[%s496 + $0x74] sm:$0xf]
        %v596 = vld [vmem:[%s496 + $0x78] sm:$0xf]
        %v597 = vld [vmem:[%s496 + $0x7c] sm:$0xf]
        %v598 = vld [vmem:[%s496 + $0x80] sm:$0xf]
        %v599 = vld [vmem:[%s496 + $0x84] sm:$0xf]
        %v600 = vld [vmem:[%s496 + $0x88] sm:$0xf]
        %v601 = vld [vmem:[%s496 + $0x8c] sm:$0xf]
        %v602 = vld [vmem:[%s496 + $0x90] sm:$0xf]
        %v603 = vld [vmem:[%s496 + $0x94] sm:$0xf]
        %v604 = vld [vmem:[%s496 + $0x98] sm:$0xf]
        %v605 = vld [vmem:[%s496 + $0x9c] sm:$0xf]
        %v606 = vld [vmem:[%s496 + $0xa0] sm:$0xf]
        %v607 = vld [vmem:[%s496 + $0xa4] sm:$0xf]
        %v608 = vld [vmem:[%s496 + $0xa8] sm:$0xf]
        %v609 = vld [vmem:[%s496 + $0xac] sm:$0xf]
        %v610 = vld [vmem:[%s496 + $0xb0] sm:$0xf]
        %v611 = vld [vmem:[%s496 + $0xb4] sm:$0xf]
        %v612 = vld [vmem:[%s496 + $0xb8] sm:$0xf]
        %v613 = vld [vmem:[%s496 + $0xbc] sm:$0xf]
        %v614 = vld [vmem:[%s496 + $0xc0] sm:$0xf]
        %v615 = vld [vmem:[%s496 + $0xc4] sm:$0xf]
        %v616 = vld [vmem:[%s496 + $0xc8] sm:$0xf]
        %v617 = vld [vmem:[%s496 + $0xcc] sm:$0xf]
        %v618 = vld [vmem:[%s496 + $0xd0] sm:$0xf]
        %v619 = vld [vmem:[%s496 + $0xd4] sm:$0xf]
        %v620 = vld [vmem:[%s496 + $0xd8] sm:$0xf]
        %v621 = vld [vmem:[%s496 + $0xdc] sm:$0xf]
        %v622 = vld [vmem:[%s496 + $0xe0] sm:$0xf]
        %v623 = vld [vmem:[%s496 + $0xe4] sm:$0xf]
        %v624 = vld [vmem:[%s496 + $0xe8] sm:$0xf]
        %v625 = vld [vmem:[%s496 + $0xec] sm:$0xf]
        %v626 = vld [vmem:[%s496 + $0xf0] sm:$0xf]
        %v627 = vld [vmem:[%s496 + $0xf4] sm:$0xf]
        %v628 = vld [vmem:[%s496 + $0xf8] sm:$0xf]
        %v629 = vld [vmem:[%s496 + $0xfc] sm:$0xf]
        %v632 = vunpack.c.l.s4 1966171168
        %v633 = vunpack.c.0.s8 %v632
        %v634 = vlaneseq
        %v635 = vshrl.u32 %v634, 7
        %v636 = vsub.s32 %v633, %v635
        %v637 = vrot.slane %v565, %v636
        %v638 = vcombine.high %v637, %v637
        %v640 = vunpack.c.l.s4 1966171168
        %v641 = vunpack.c.0.s8 %v640
        %v642 = vlaneseq
        %v643 = vshrl.u32 %v642, 7
        %v644 = vsub.s32 %v641, %v643
        %v645 = vrot.slane %v637, %v644
        %v647 = vunpack.c.l.s4 1966171168
        %v648 = vunpack.c.0.s8 %v647
        %v649 = vlaneseq
        %v650 = vshrl.u32 %v649, 7
        %v651 = vsub.s32 %v648, %v650
        %v652 = vrot.slane %v638, %v651
        %v653 = vcombine.high %v645, %v645
        %v654 = vcombine.high %v652, %v652
        %v723 = vunpack.c.l.b16 %v566
        %v724 = vunpack.c.l.b16 %v567
        %v725 = vunpack.c.l.b16 %v568
        %v726 = vunpack.c.l.b16 %v569
        %v727 = vunpack.c.l.b16 %v570
        %v728 = vunpack.c.l.b16 %v571
        %v729 = vunpack.c.l.b16 %v572
        %v730 = vunpack.c.l.b16 %v573
        %v731 = vunpack.c.l.b16 %v574
        %v732 = vunpack.c.l.b16 %v575
        %v733 = vunpack.c.l.b16 %v576
        %v734 = vunpack.c.l.b16 %v577
        %v735 = vunpack.c.l.b16 %v578
        %v736 = vunpack.c.l.b16 %v579
        %v737 = vunpack.c.l.b16 %v580
        %v738 = vunpack.c.l.b16 %v581
        %v739 = vunpack.c.l.b16 %v582
        %v740 = vunpack.c.l.b16 %v583
        %v741 = vunpack.c.l.b16 %v584
        %v742 = vunpack.c.l.b16 %v585
        %v743 = vunpack.c.l.b16 %v586
        %v744 = vunpack.c.l.b16 %v587
        %v745 = vunpack.c.l.b16 %v588
        %v746 = vunpack.c.l.b16 %v589
        %v747 = vunpack.c.l.b16 %v590
        %v748 = vunpack.c.l.b16 %v591
        %v749 = vunpack.c.l.b16 %v592
        %v750 = vunpack.c.l.b16 %v593
        %v751 = vunpack.c.l.b16 %v594
        %v752 = vunpack.c.l.b16 %v595
        %v753 = vunpack.c.l.b16 %v596
        %v754 = vunpack.c.l.b16 %v597
        %v755 = vunpack.c.l.b16 %v598
        %v756 = vunpack.c.l.b16 %v599
        %v757 = vunpack.c.l.b16 %v600
        %v758 = vunpack.c.l.b16 %v601
        %v759 = vunpack.c.l.b16 %v602
        %v760 = vunpack.c.l.b16 %v603
        %v761 = vunpack.c.l.b16 %v604
        %v762 = vunpack.c.l.b16 %v605
        %v763 = vunpack.c.l.b16 %v606
        %v764 = vunpack.c.l.b16 %v607
        %v765 = vunpack.c.l.b16 %v608
        %v766 = vunpack.c.l.b16 %v609
        %v767 = vunpack.c.l.b16 %v610
        %v768 = vunpack.c.l.b16 %v611
        %v769 = vunpack.c.l.b16 %v612
        %v770 = vunpack.c.l.b16 %v613
        %v771 = vunpack.c.l.b16 %v614
        %v772 = vunpack.c.l.b16 %v615
        %v773 = vunpack.c.l.b16 %v616
        %v774 = vunpack.c.l.b16 %v617
        %v775 = vunpack.c.l.b16 %v618
        %v776 = vunpack.c.l.b16 %v619
        %v777 = vunpack.c.l.b16 %v620
        %v778 = vunpack.c.l.b16 %v621
        %v779 = vunpack.c.l.b16 %v622
        %v780 = vunpack.c.l.b16 %v623
        %v781 = vunpack.c.l.b16 %v624
        %v782 = vunpack.c.l.b16 %v625
        %v783 = vunpack.c.l.b16 %v626
        %v784 = vunpack.c.l.b16 %v627
        %v785 = vunpack.c.l.b16 %v628
        %v786 = vunpack.c.l.b16 %v629
        %v787 = vpack.c.b16 %v724, %v723
        %v788 = vpack.c.b16 %v726, %v725
        %v789 = vpack.c.b16 %v728, %v727
        %v790 = vpack.c.b16 %v730, %v729
        %v791 = vpack.c.b16 %v732, %v731
        %v792 = vpack.c.b16 %v734, %v733
        %v793 = vpack.c.b16 %v736, %v735
        %v794 = vpack.c.b16 %v738, %v737
        %v795 = vpack.c.b16 %v740, %v739
        %v796 = vpack.c.b16 %v742, %v741
        %v797 = vpack.c.b16 %v744, %v743
        %v798 = vpack.c.b16 %v746, %v745
        %v799 = vpack.c.b16 %v748, %v747
        %v800 = vpack.c.b16 %v750, %v749
        %v801 = vpack.c.b16 %v752, %v751
        %v802 = vpack.c.b16 %v754, %v753
        %v803 = vpack.c.b16 %v756, %v755
        %v804 = vpack.c.b16 %v758, %v757
        %v805 = vpack.c.b16 %v760, %v759
        %v806 = vpack.c.b16 %v762, %v761
        %v807 = vpack.c.b16 %v764, %v763
        %v808 = vpack.c.b16 %v766, %v765
        %v809 = vpack.c.b16 %v768, %v767
        %v810 = vpack.c.b16 %v770, %v769
        %v811 = vpack.c.b16 %v772, %v771
        %v812 = vpack.c.b16 %v774, %v773
        %v813 = vpack.c.b16 %v776, %v775
        %v814 = vpack.c.b16 %v778, %v777
        %v815 = vpack.c.b16 %v780, %v779
        %v816 = vpack.c.b16 %v782, %v781
        %v817 = vpack.c.b16 %v784, %v783
        %v818 = vpack.c.b16 %v786, %v785
        %851 = vmatprep.subr.bf16.mxu0 0
        %852 = vmatpush1.bf16.msra.mxu0 %v787
        %853 = vmatprep.subr.bf16.mxu0 0
        %854 = vmatpush1.bf16.msra.mxu0 %v788
        %855 = vmatprep.subr.bf16.mxu0 0
        %856 = vmatpush1.bf16.msra.mxu0 %v789
        %857 = vmatprep.subr.bf16.mxu0 0
        %858 = vmatpush1.bf16.msra.mxu0 %v790
        %859 = vmatprep.subr.bf16.mxu0 0
        %860 = vmatpush1.bf16.msra.mxu0 %v791
        %861 = vmatprep.subr.bf16.mxu0 0
        %862 = vmatpush1.bf16.msra.mxu0 %v792
        %863 = vmatprep.subr.bf16.mxu0 0
        %864 = vmatpush1.bf16.msra.mxu0 %v793
        %865 = vmatprep.subr.bf16.mxu0 0
        %866 = vmatpush1.bf16.msra.mxu0 %v794
        %867 = vmatprep.subr.bf16.mxu0 0
        %868 = vmatpush1.bf16.msra.mxu0 %v795
        %869 = vmatprep.subr.bf16.mxu0 0
        %870 = vmatpush1.bf16.msra.mxu0 %v796
        %871 = vmatprep.subr.bf16.mxu0 0
        %872 = vmatpush1.bf16.msra.mxu0 %v797
        %873 = vmatprep.subr.bf16.mxu0 0
        %874 = vmatpush1.bf16.msra.mxu0 %v798
        %875 = vmatprep.subr.bf16.mxu0 0
        %876 = vmatpush1.bf16.msra.mxu0 %v799
        %877 = vmatprep.subr.bf16.mxu0 0
        %878 = vmatpush1.bf16.msra.mxu0 %v800
        %879 = vmatprep.subr.bf16.mxu0 0
        %880 = vmatpush1.bf16.msra.mxu0 %v801
        %881 = vmatprep.subr.bf16.mxu0 0
        %882 = vmatpush1.bf16.msra.mxu0 %v802
        %883 = vmatprep.mubr.bf16.mxu0 %v652
        %884 = vmatmul.mubr.bf16.gmra.mrb[0].mxu0 %v645
        %v885 = vpop.f32.mrb[0].mxu0
        %v886 = vadd.f32 0.0, %v885
        %v887 = vpop.f32.mrb[0].mxu0
        %v888 = vpop.f32.mrb[0].mxu0
        %v889 = vpop.f32.mrb[0].mxu0
        %890 = vdwg.mxu0
        %891 = vmatprep.subr.bf16.mxu0 0
        %892 = vmatpush1.bf16.msra.mxu0 %v803
        %893 = vmatprep.subr.bf16.mxu0 0
        %894 = vmatpush1.bf16.msra.mxu0 %v804
        %895 = vmatprep.subr.bf16.mxu0 0
        %896 = vmatpush1.bf16.msra.mxu0 %v805
        %897 = vmatprep.subr.bf16.mxu0 0
        %898 = vmatpush1.bf16.msra.mxu0 %v806
        %899 = vmatprep.subr.bf16.mxu0 0
        %900 = vmatpush1.bf16.msra.mxu0 %v807
        %901 = vmatprep.subr.bf16.mxu0 0
        %902 = vmatpush1.bf16.msra.mxu0 %v808
        %903 = vmatprep.subr.bf16.mxu0 0
        %904 = vmatpush1.bf16.msra.mxu0 %v809
        %905 = vmatprep.subr.bf16.mxu0 0
        %906 = vmatpush1.bf16.msra.mxu0 %v810
        %907 = vmatprep.subr.bf16.mxu0 0
        %908 = vmatpush1.bf16.msra.mxu0 %v811
        %909 = vmatprep.subr.bf16.mxu0 0
        %910 = vmatpush1.bf16.msra.mxu0 %v812
        %911 = vmatprep.subr.bf16.mxu0 0
        %912 = vmatpush1.bf16.msra.mxu0 %v813
        %913 = vmatprep.subr.bf16.mxu0 0
        %914 = vmatpush1.bf16.msra.mxu0 %v814
        %915 = vmatprep.subr.bf16.mxu0 0
        %916 = vmatpush1.bf16.msra.mxu0 %v815
        %917 = vmatprep.subr.bf16.mxu0 0
        %918 = vmatpush1.bf16.msra.mxu0 %v816
        %919 = vmatprep.subr.bf16.mxu0 0
        %920 = vmatpush1.bf16.msra.mxu0 %v817
        %921 = vmatprep.subr.bf16.mxu0 0
        %922 = vmatpush1.bf16.msra.mxu0 %v818
        %923 = vmatprep.mubr.bf16.mxu0 %v654
        %924 = vmatmul.mubr.bf16.gmra.mrb[0].mxu0 %v653
        %v925 = vpop.f32.mrb[0].mxu0
        %v926 = vadd.f32 %v886, %v925
        %v927 = vpop.f32.mrb[0].mxu0
        %v928 = vpop.f32.mrb[0].mxu0
        %v929 = vpop.f32.mrb[0].mxu0
        %930 = vdwg.mxu0
        %v931 = vadd.f32 %v564, %v926
        %932 = vst [vmem:[#allocation2] sm:$0x3] %v931
        %p933 = scmp.eq.s32.totalorder %s39, 1
        // Predicated region
        $region97: #{tpu_custom_call.1} parent=71 // pred_check
          %p934 = pneg %p933
        $region98: #{tpu_custom_call.1} parent=71 // pred_check_branch
          %936 = sbr.rel (%p934) target = $region100
        $region99: #{tpu_custom_call.1} parent=71 // pred_region
          %v937 = vld [vmem:[#allocation2] sm:$0x3]
          %v938 = vld [vmem:[%s2] sm:$0x1]
          %v940 = vlaneseq
          %v941 = vshrl.u32 %v940, 7
          %v942 = vsub.s32 0, %v941
          %v943 = vrot.slane %v938, %v942
          %v945 = vadd.f32 %v937, %v943
          %v946 = vld [vmem:[#allocation8] sm:$0xf]
          %v947 = vld [vmem:[#allocation8 + $0x4] sm:$0xf]
          %v948 = vld [vmem:[#allocation8 + $0x8] sm:$0xf]
          %v949 = vld [vmem:[#allocation8 + $0xc] sm:$0xf]
          %v950 = vld [vmem:[#allocation8 + $0x10] sm:$0xf]
          %v951 = vld [vmem:[#allocation8 + $0x14] sm:$0xf]
          %v952 = vld [vmem:[#allocation8 + $0x18] sm:$0xf]
          %v953 = vld [vmem:[#allocation8 + $0x1c] sm:$0xf]
          %v954 = vld [vmem:[#allocation8 + $0x20] sm:$0xf]
          %v955 = vld [vmem:[#allocation8 + $0x24] sm:$0xf]
          %v956 = vld [vmem:[#allocation8 + $0x28] sm:$0xf]
          %v957 = vld [vmem:[#allocation8 + $0x2c] sm:$0xf]
          %v958 = vld [vmem:[#allocation8 + $0x30] sm:$0xf]
          %v959 = vld [vmem:[#allocation8 + $0x34] sm:$0xf]
          %v960 = vld [vmem:[#allocation8 + $0x38] sm:$0xf]
          %v961 = vld [vmem:[#allocation8 + $0x3c] sm:$0xf]
          %v962 = vunpack.c.l.bf16 %v946
          %v963 = vunpack.c.l.bf16 %v947
          %v964 = vunpack.c.l.bf16 %v948
          %v965 = vunpack.c.l.bf16 %v949
          %v966 = vunpack.c.l.bf16 %v950
          %v967 = vunpack.c.l.bf16 %v951
          %v968 = vunpack.c.l.bf16 %v952
          %v969 = vunpack.c.l.bf16 %v953
          %v970 = vunpack.c.l.bf16 %v954
          %v971 = vunpack.c.l.bf16 %v955
          %v972 = vunpack.c.l.bf16 %v956
          %v973 = vunpack.c.l.bf16 %v957
          %v974 = vunpack.c.l.bf16 %v958
          %v975 = vunpack.c.l.bf16 %v959
          %v976 = vunpack.c.l.bf16 %v960
          %v977 = vunpack.c.l.bf16 %v961
          %v978 = vld [vmem:[%s4] sm:$0x1]
          %v980 = vlaneseq
          %v981 = vshrl.u32 %v980, 7
          %v982 = vsub.s32 0, %v981
          %v983 = vrot.slane %v978, %v982
          %985 = vmatprep.subr.mxu0 0.0
          %986 = vmatpush1.msra.mxu0 %v962
          %987 = vmatprep.subr.mxu0 0.0
          %988 = vmatpush1.msra.mxu0 %v963
          %989 = vmatprep.subr.mxu0 0.0
          %990 = vmatpush1.msra.mxu0 %v964
          %991 = vmatprep.subr.mxu0 0.0
          %992 = vmatpush1.msra.mxu0 %v965
          %993 = vmatprep.subr.mxu0 0.0
          %994 = vmatpush1.msra.mxu0 %v966
          %995 = vmatprep.subr.mxu0 0.0
          %996 = vmatpush1.msra.mxu0 %v967
          %997 = vmatprep.subr.mxu0 0.0
          %998 = vmatpush1.msra.mxu0 %v968
          %999 = vmatprep.subr.mxu0 0.0
          %1000 = vmatpush1.msra.mxu0 %v969
          %1001 = vmatprep.subr.mxu0 0.0
          %1002 = vmatpush1.msra.mxu0 %v970
          %1003 = vmatprep.subr.mxu0 0.0
          %1004 = vmatpush1.msra.mxu0 %v971
          %1005 = vmatprep.subr.mxu0 0.0
          %1006 = vmatpush1.msra.mxu0 %v972
          %1007 = vmatprep.subr.mxu0 0.0
          %1008 = vmatpush1.msra.mxu0 %v973
          %1009 = vmatprep.subr.mxu0 0.0
          %1010 = vmatpush1.msra.mxu0 %v974
          %1011 = vmatprep.subr.mxu0 0.0
          %1012 = vmatpush1.msra.mxu0 %v975
          %1013 = vmatprep.subr.mxu0 0.0
          %1014 = vmatpush1.msra.mxu0 %v976
          %1015 = vmatprep.subr.mxu0 0.0
          %1016 = vmatpush1.msra.mxu0 %v977
          %1017 = vmatprep.subr.mxu0 0.0
          %1018 = vmatpush1.msra.mxu0 0.0
          %1019 = vmatprep.subr.mxu0 0.0
          %1020 = vmatpush1.msra.mxu0 0.0
          %1021 = vmatprep.subr.mxu0 0.0
          %1022 = vmatpush1.msra.mxu0 0.0
          %1023 = vmatprep.subr.mxu0 0.0
          %1024 = vmatpush1.msra.mxu0 0.0
          %1025 = vmatprep.subr.mxu0 0.0
          %1026 = vmatpush1.msra.mxu0 0.0
          %1027 = vmatprep.subr.mxu0 0.0
          %1028 = vmatpush1.msra.mxu0 0.0
          %1029 = vmatprep.subr.mxu0 0.0
          %1030 = vmatpush1.msra.mxu0 0.0
          %1031 = vmatprep.subr.mxu0 0.0
          %1032 = vmatpush1.msra.mxu0 0.0
          %1033 = vmatprep.subr.mxu0 0.0
          %1034 = vmatpush1.msra.mxu0 0.0
          %1035 = vmatprep.subr.mxu0 0.0
          %1036 = vmatpush1.msra.mxu0 0.0
          %1037 = vmatprep.subr.mxu0 0.0
          %1038 = vmatpush1.msra.mxu0 0.0
          %1039 = vmatprep.subr.mxu0 0.0
          %1040 = vmatpush1.msra.mxu0 0.0
          %1041 = vmatprep.subr.mxu0 0.0
          %1042 = vmatpush1.msra.mxu0 0.0
          %1043 = vmatprep.subr.mxu0 0.0
          %1044 = vmatpush1.msra.mxu0 0.0
          %1045 = vmatprep.subr.mxu0 0.0
          %1046 = vmatpush1.msra.mxu0 0.0
          %1047 = vmatprep.subr.mxu0 0.0
          %1048 = vmatpush1.msra.mxu0 0.0
          %1049 = vmatprep.mubr.f32.mxu0 0.0
          %1050 = vmatmul.mubr.f32.gmra.mrb[0].mxu0 %v945
          %v1051 = vpop.f32.mrb[0].mxu0
          %v1052 = vadd.f32 %v983, %v1051
          %v1053 = vpop.f32.mrb[0].mxu0
          %1054 = vdwg.mxu0
          %v1055 = vld [vmem:[%s5] sm:$0x1]
          %v1056 = vld [vmem:[%s6] sm:$0x1]
          %vm1057 = vcmask 1041408
          %v1058 = vsel %vm1057, %v1052, 0.0
          %v1059 = vrot.slane %v1058, 4
          %v1060 = vadd.f32 %v1058, %v1059
          %v1061 = vrot.slane %v1060, 2
          %v1062 = vadd.f32 %v1060, %v1061
          %v1063 = vrot.slane %v1062, 1
          %v1064 = vadd.f32 %v1062, %v1063
          %v1065 = vrcp.pop 2.0
          %v1066 = vmul.f32 %v1064, %v1065
          %v1067 = vsub.f32 %v1052, %v1066
          %v1068 = vmul.f32 %v1067, %v1067
          %v1069 = vsel %vm1057, %v1068, 0.0
          %v1070 = vrot.slane %v1069, 4
          %v1071 = vadd.f32 %v1069, %v1070
          %v1072 = vrot.slane %v1071, 2
          %v1073 = vadd.f32 %v1071, %v1072
          %v1074 = vrot.slane %v1073, 1
          %v1075 = vadd.f32 %v1073, %v1074
          %v1076 = vmul.f32 %v1075, %v1065
          %v1077 = vadd.f32 %v1076, 1e-05
          %v1078 = vrsqrt.pop %v1077
          %v1079 = vmul.f32 %v1055, %v1078
          %v1080 = vmul.f32 %v1066, %v1079
          %v1081 = vsub.f32 %v1056, %v1080
          %v1083 = vlaneseq
          %v1084 = vshrl.u32 %v1083, 7
          %v1085 = vsub.s32 0, %v1084
          %v1086 = vrot.slane %v1079, %v1085
          %v1088 = vmul.f32 %v1052, %v1086
          %v1090 = vlaneseq
          %v1091 = vshrl.u32 %v1090, 7
          %v1092 = vsub.s32 0, %v1091
          %v1093 = vrot.slane %v1081, %v1092
          %v1095 = vadd.f32 %v1088, %v1093
          %v1096 = vmax.f32 %v1095, 0.0
          %v1097 = vld [vmem:[#allocation9] sm:$0xf]
          %v1098 = vld [vmem:[#allocation9 + $0x4] sm:$0xf]
          %v1099 = vld [vmem:[#allocation9 + $0x8] sm:$0xf]
          %v1100 = vld [vmem:[#allocation9 + $0xc] sm:$0xf]
          %v1101 = vld [vmem:[#allocation9 + $0x10] sm:$0xf]
          %v1102 = vld [vmem:[#allocation9 + $0x14] sm:$0xf]
          %v1103 = vld [vmem:[#allocation9 + $0x18] sm:$0xf]
          %v1104 = vld [vmem:[#allocation9 + $0x1c] sm:$0xf]
          %v1105 = vld [vmem:[#allocation9 + $0x20] sm:$0xf]
          %v1106 = vld [vmem:[#allocation9 + $0x24] sm:$0xf]
          %v1107 = vld [vmem:[#allocation9 + $0x28] sm:$0xf]
          %v1108 = vld [vmem:[#allocation9 + $0x2c] sm:$0xf]
          %v1109 = vld [vmem:[#allocation9 + $0x30] sm:$0xf]
          %v1110 = vld [vmem:[#allocation9 + $0x34] sm:$0xf]
          %v1111 = vld [vmem:[#allocation9 + $0x38] sm:$0xf]
          %v1112 = vld [vmem:[#allocation9 + $0x3c] sm:$0xf]
          %v1113 = vunpack.c.l.bf16 %v1097
          %v1114 = vunpack.c.l.bf16 %v1098
          %v1115 = vunpack.c.l.bf16 %v1099
          %v1116 = vunpack.c.l.bf16 %v1100
          %v1117 = vunpack.c.l.bf16 %v1101
          %v1118 = vunpack.c.l.bf16 %v1102
          %v1119 = vunpack.c.l.bf16 %v1103
          %v1120 = vunpack.c.l.bf16 %v1104
          %v1121 = vunpack.c.l.bf16 %v1105
          %v1122 = vunpack.c.l.bf16 %v1106
          %v1123 = vunpack.c.l.bf16 %v1107
          %v1124 = vunpack.c.l.bf16 %v1108
          %v1125 = vunpack.c.l.bf16 %v1109
          %v1126 = vunpack.c.l.bf16 %v1110
          %v1127 = vunpack.c.l.bf16 %v1111
          %v1128 = vunpack.c.l.bf16 %v1112
          %v1129 = vld [vmem:[%s8] sm:$0x1]
          %v1131 = vlaneseq
          %v1132 = vshrl.u32 %v1131, 7
          %v1133 = vsub.s32 0, %v1132
          %v1134 = vrot.slane %v1129, %v1133
          %1136 = vmatprep.subr.mxu0 0.0
          %1137 = vmatpush1.msra.mxu0 %v1113
          %1138 = vmatprep.subr.mxu0 0.0
          %1139 = vmatpush1.msra.mxu0 %v1114
          %1140 = vmatprep.subr.mxu0 0.0
          %1141 = vmatpush1.msra.mxu0 %v1115
          %1142 = vmatprep.subr.mxu0 0.0
          %1143 = vmatpush1.msra.mxu0 %v1116
          %1144 = vmatprep.subr.mxu0 0.0
          %1145 = vmatpush1.msra.mxu0 %v1117
          %1146 = vmatprep.subr.mxu0 0.0
          %1147 = vmatpush1.msra.mxu0 %v1118
          %1148 = vmatprep.subr.mxu0 0.0
          %1149 = vmatpush1.msra.mxu0 %v1119
          %1150 = vmatprep.subr.mxu0 0.0
          %1151 = vmatpush1.msra.mxu0 %v1120
          %1152 = vmatprep.subr.mxu0 0.0
          %1153 = vmatpush1.msra.mxu0 %v1121
          %1154 = vmatprep.subr.mxu0 0.0
          %1155 = vmatpush1.msra.mxu0 %v1122
          %1156 = vmatprep.subr.mxu0 0.0
          %1157 = vmatpush1.msra.mxu0 %v1123
          %1158 = vmatprep.subr.mxu0 0.0
          %1159 = vmatpush1.msra.mxu0 %v1124
          %1160 = vmatprep.subr.mxu0 0.0
          %1161 = vmatpush1.msra.mxu0 %v1125
          %1162 = vmatprep.subr.mxu0 0.0
          %1163 = vmatpush1.msra.mxu0 %v1126
          %1164 = vmatprep.subr.mxu0 0.0
          %1165 = vmatpush1.msra.mxu0 %v1127
          %1166 = vmatprep.subr.mxu0 0.0
          %1167 = vmatpush1.msra.mxu0 %v1128
          %1168 = vmatprep.subr.mxu0 0.0
          %1169 = vmatpush1.msra.mxu0 0.0
          %1170 = vmatprep.subr.mxu0 0.0
          %1171 = vmatpush1.msra.mxu0 0.0
          %1172 = vmatprep.subr.mxu0 0.0
          %1173 = vmatpush1.msra.mxu0 0.0
          %1174 = vmatprep.subr.mxu0 0.0
          %1175 = vmatpush1.msra.mxu0 0.0
          %1176 = vmatprep.subr.mxu0 0.0
          %1177 = vmatpush1.msra.mxu0 0.0
          %1178 = vmatprep.subr.mxu0 0.0
          %1179 = vmatpush1.msra.mxu0 0.0
          %1180 = vmatprep.subr.mxu0 0.0
          %1181 = vmatpush1.msra.mxu0 0.0
          %1182 = vmatprep.subr.mxu0 0.0
          %1183 = vmatpush1.msra.mxu0 0.0
          %1184 = vmatprep.subr.mxu0 0.0
          %1185 = vmatpush1.msra.mxu0 0.0
          %1186 = vmatprep.subr.mxu0 0.0
          %1187 = vmatpush1.msra.mxu0 0.0
          %1188 = vmatprep.subr.mxu0 0.0
          %1189 = vmatpush1.msra.mxu0 0.0
          %1190 = vmatprep.subr.mxu0 0.0
          %1191 = vmatpush1.msra.mxu0 0.0
          %1192 = vmatprep.subr.mxu0 0.0
          %1193 = vmatpush1.msra.mxu0 0.0
          %1194 = vmatprep.subr.mxu0 0.0
          %1195 = vmatpush1.msra.mxu0 0.0
          %1196 = vmatprep.subr.mxu0 0.0
          %1197 = vmatpush1.msra.mxu0 0.0
          %1198 = vmatprep.subr.mxu0 0.0
          %1199 = vmatpush1.msra.mxu0 0.0
          %1200 = vmatprep.mubr.f32.mxu0 0.0
          %1201 = vmatmul.mubr.f32.gmra.mrb[0].mxu0 %v1096
          %v1202 = vpop.f32.mrb[0].mxu0
          %v1203 = vadd.f32 %v1134, %v1202
          %v1204 = vpop.f32.mrb[0].mxu0
          %1205 = vdwg.mxu0
          %v1206 = vld [vmem:[%s9] sm:$0x1]
          %v1207 = vld [vmem:[%s10] sm:$0x1]
          %v1208 = vsel %vm1057, %v1203, 0.0
          %v1209 = vrot.slane %v1208, 4
          %v1210 = vadd.f32 %v1208, %v1209
          %v1211 = vrot.slane %v1210, 2
          %v1212 = vadd.f32 %v1210, %v1211
          %v1213 = vrot.slane %v1212, 1
          %v1214 = vadd.f32 %v1212, %v1213
          %v1215 = vmul.f32 %v1214, %v1065
          %v1216 = vsub.f32 %v1203, %v1215
          %v1217 = vmul.f32 %v1216, %v1216
          %v1218 = vsel %vm1057, %v1217, 0.0
          %v1219 = vrot.slane %v1218, 4
          %v1220 = vadd.f32 %v1218, %v1219
          %v1221 = vrot.slane %v1220, 2
          %v1222 = vadd.f32 %v1220, %v1221
          %v1223 = vrot.slane %v1222, 1
          %v1224 = vadd.f32 %v1222, %v1223
          %v1225 = vmul.f32 %v1224, %v1065
          %v1226 = vadd.f32 %v1225, 1e-05
          %v1227 = vrsqrt.pop %v1226
          %v1228 = vmul.f32 %v1206, %v1227
          %v1229 = vmul.f32 %v1215, %v1228
          %v1230 = vsub.f32 %v1207, %v1229
          %v1232 = vlaneseq
          %v1233 = vshrl.u32 %v1232, 7
          %v1234 = vsub.s32 0, %v1233
          %v1235 = vrot.slane %v1228, %v1234
          %v1237 = vmul.f32 %v1203, %v1235
          %v1239 = vlaneseq
          %v1240 = vshrl.u32 %v1239, 7
          %v1241 = vsub.s32 0, %v1240
          %v1242 = vrot.slane %v1230, %v1241
          %v1244 = vadd.f32 %v1237, %v1242
          %v1245 = vmax.f32 %v1244, 0.0
          %v1246 = vld [vmem:[#allocation11] sm:$0xf]
          %v1247 = vld [vmem:[#allocation11 + $0x4] sm:$0xf]
          %v1248 = vld [vmem:[#allocation11 + $0x8] sm:$0xf]
          %v1249 = vld [vmem:[#allocation11 + $0xc] sm:$0xf]
          %v1250 = vld [vmem:[#allocation11 + $0x10] sm:$0xf]
          %v1251 = vld [vmem:[#allocation11 + $0x14] sm:$0xf]
          %v1252 = vld [vmem:[#allocation11 + $0x18] sm:$0xf]
          %v1253 = vld [vmem:[#allocation11 + $0x1c] sm:$0xf]
          %v1254 = vld [vmem:[#allocation11 + $0x20] sm:$0xf]
          %v1255 = vld [vmem:[#allocation11 + $0x24] sm:$0xf]
          %v1256 = vld [vmem:[#allocation11 + $0x28] sm:$0xf]
          %v1257 = vld [vmem:[#allocation11 + $0x2c] sm:$0xf]
          %v1258 = vld [vmem:[#allocation11 + $0x30] sm:$0xf]
          %v1259 = vld [vmem:[#allocation11 + $0x34] sm:$0xf]
          %v1260 = vld [vmem:[#allocation11 + $0x38] sm:$0xf]
          %v1261 = vld [vmem:[#allocation11 + $0x3c] sm:$0xf]
          %v1262 = vunpack.c.l.bf16 %v1246
          %v1263 = vunpack.c.l.bf16 %v1247
          %v1264 = vunpack.c.l.bf16 %v1248
          %v1265 = vunpack.c.l.bf16 %v1249
          %v1266 = vunpack.c.l.bf16 %v1250
          %v1267 = vunpack.c.l.bf16 %v1251
          %v1268 = vunpack.c.l.bf16 %v1252
          %v1269 = vunpack.c.l.bf16 %v1253
          %v1270 = vunpack.c.l.bf16 %v1254
          %v1271 = vunpack.c.l.bf16 %v1255
          %v1272 = vunpack.c.l.bf16 %v1256
          %v1273 = vunpack.c.l.bf16 %v1257
          %v1274 = vunpack.c.l.bf16 %v1258
          %v1275 = vunpack.c.l.bf16 %v1259
          %v1276 = vunpack.c.l.bf16 %v1260
          %v1277 = vunpack.c.l.bf16 %v1261
          %v1278 = vld [vmem:[%s12] sm:$0x1]
          %v1280 = vlaneseq
          %v1281 = vshrl.u32 %v1280, 7
          %v1282 = vsub.s32 0, %v1281
          %v1283 = vrot.slane %v1278, %v1282
          %1285 = vmatprep.subr.mxu0 0.0
          %1286 = vmatpush1.msra.mxu0 %v1262
          %1287 = vmatprep.subr.mxu0 0.0
          %1288 = vmatpush1.msra.mxu0 %v1263
          %1289 = vmatprep.subr.mxu0 0.0
          %1290 = vmatpush1.msra.mxu0 %v1264
          %1291 = vmatprep.subr.mxu0 0.0
          %1292 = vmatpush1.msra.mxu0 %v1265
          %1293 = vmatprep.subr.mxu0 0.0
          %1294 = vmatpush1.msra.mxu0 %v1266
          %1295 = vmatprep.subr.mxu0 0.0
          %1296 = vmatpush1.msra.mxu0 %v1267
          %1297 = vmatprep.subr.mxu0 0.0
          %1298 = vmatpush1.msra.mxu0 %v1268
          %1299 = vmatprep.subr.mxu0 0.0
          %1300 = vmatpush1.msra.mxu0 %v1269
          %1301 = vmatprep.subr.mxu0 0.0
          %1302 = vmatpush1.msra.mxu0 %v1270
          %1303 = vmatprep.subr.mxu0 0.0
          %1304 = vmatpush1.msra.mxu0 %v1271
          %1305 = vmatprep.subr.mxu0 0.0
          %1306 = vmatpush1.msra.mxu0 %v1272
          %1307 = vmatprep.subr.mxu0 0.0
          %1308 = vmatpush1.msra.mxu0 %v1273
          %1309 = vmatprep.subr.mxu0 0.0
          %1310 = vmatpush1.msra.mxu0 %v1274
          %1311 = vmatprep.subr.mxu0 0.0
          %1312 = vmatpush1.msra.mxu0 %v1275
          %1313 = vmatprep.subr.mxu0 0.0
          %1314 = vmatpush1.msra.mxu0 %v1276
          %1315 = vmatprep.subr.mxu0 0.0
          %1316 = vmatpush1.msra.mxu0 %v1277
          %1317 = vmatprep.subr.mxu0 0.0
          %1318 = vmatpush1.msra.mxu0 0.0
          %1319 = vmatprep.subr.mxu0 0.0
          %1320 = vmatpush1.msra.mxu0 0.0
          %1321 = vmatprep.subr.mxu0 0.0
          %1322 = vmatpush1.msra.mxu0 0.0
          %1323 = vmatprep.subr.mxu0 0.0
          %1324 = vmatpush1.msra.mxu0 0.0
          %1325 = vmatprep.subr.mxu0 0.0
          %1326 = vmatpush1.msra.mxu0 0.0
          %1327 = vmatprep.subr.mxu0 0.0
          %1328 = vmatpush1.msra.mxu0 0.0
          %1329 = vmatprep.subr.mxu0 0.0
          %1330 = vmatpush1.msra.mxu0 0.0
          %1331 = vmatprep.subr.mxu0 0.0
          %1332 = vmatpush1.msra.mxu0 0.0
          %1333 = vmatprep.subr.mxu0 0.0
          %1334 = vmatpush1.msra.mxu0 0.0
          %1335 = vmatprep.subr.mxu0 0.0
          %1336 = vmatpush1.msra.mxu0 0.0
          %1337 = vmatprep.subr.mxu0 0.0
          %1338 = vmatpush1.msra.mxu0 0.0
          %1339 = vmatprep.subr.mxu0 0.0
          %1340 = vmatpush1.msra.mxu0 0.0
          %1341 = vmatprep.subr.mxu0 0.0
          %1342 = vmatpush1.msra.mxu0 0.0
          %1343 = vmatprep.subr.mxu0 0.0
          %1344 = vmatpush1.msra.mxu0 0.0
          %1345 = vmatprep.subr.mxu0 0.0
          %1346 = vmatpush1.msra.mxu0 0.0
          %1347 = vmatprep.subr.mxu0 0.0
          %1348 = vmatpush1.msra.mxu0 0.0
          %1349 = vmatprep.mubr.f32.mxu0 0.0
          %1350 = vmatmul.mubr.f32.gmra.mrb[0].mxu0 %v1245
          %v1351 = vpop.f32.mrb[0].mxu0
          %v1352 = vadd.f32 %v1283, %v1351
          %v1353 = vpop.f32.mrb[0].mxu0
          %1354 = vdwg.mxu0
          %1355 = vst [vmem:[%s555] sm:$0x3] %v1352
        $region100: #{tpu_custom_call.1} parent=71 // pred_fallthru
          _
        %s1356 = sand.u32 %s339, 1
        %s1357 = scalar_lea.sflag [#allocation5], %s1356
        %s1358 = sand.u32 %s339, 1
        %s1359 = smul.addr %s1358, 2
        %s1360 = scalar_lea.vmem [#allocation12], %s1359
        // Predicated region
        $region101: #{tpu_custom_call.1} parent=71 // pred_check
          %p1361 = pneg %p349
        $region102: #{tpu_custom_call.1} parent=71 // pred_check_branch
          %1363 = sbr.rel (%p1361) target = $region104
        $region103: #{tpu_custom_call.1} parent=71 // pred_region
          %s1365 = ssub.s32 32, 32
          %1366 = vsyncadd %s1357, %s1365
          %s1367 = smul.addr %s38, 32
          %s1368 = scalar_lea.hbm %s13, %s1367
          %s1370 = sshll.u32 %s1360, 4
          %s1371 = int_to_ptr.vmem [resolvable:$true] %s1370
          %1373 = dma.vmem_to_hbm [thread:$0]  %s1371, 32, %s1368, %s1357
        $region104: #{tpu_custom_call.1} parent=71 // pred_fallthru
          _
      $region72: #{tpu_custom_call.1} parent=5 // pred_fallthru
        _
      %p1374 = scmp.le.s32.totalorder 2, %s29
      // Predicated region
      $region105: #{tpu_custom_call.1} parent=5 // pred_check
        %p1375 = pneg %p1374
      $region106: #{tpu_custom_call.1} parent=5 // pred_check_branch
        %1377 = sbr.rel (%p1375) target = $region108
      $region107: #{tpu_custom_call.1} parent=5 // pred_region
        %s1378 = ssub.s32 %s29, 2
        // Predicated region
        $region109: #{tpu_custom_call.1} parent=107 // pred_check
          %p1379 = pneg %p355
        $region110: #{tpu_custom_call.1} parent=107 // pred_check_branch
          %1381 = sbr.rel (%p1379) target = $region112
        $region111: #{tpu_custom_call.1} parent=107 // pred_region
          %s1382 = sand.u32 %s340, 1
          %s1383 = scalar_lea.sflag [#allocation5], %s1382
          %s1384 = sand.u32 %s340, 1
          %s1385 = smul.addr %s1384, 2
          %s1386 = scalar_lea.vmem [#allocation12], %s1385
          %1387 = dma.done %s1383, 32
        $region112: #{tpu_custom_call.1} parent=107 // pred_fallthru
          _
      $region108: #{tpu_custom_call.1} parent=5 // pred_fallthru
        _
    $region6: #{tpu_custom_call.1} parent=1 // loop_footer
      %s33 = sadd.s32 1, %s29
    $region7: #{tpu_custom_call.1} parent=1 // loop_footer_branch
      %28 = sbr.rel target = $region3
    $region8: #{tpu_custom_call.1} parent=1 // loop_exit
      _
    %1388 = vsyncpa [#allocation4], 1
    %s1389 = scalar_lea.sflag [#allocation4], 1
    %1390 = vsyncpa %s1389, 1
    %1391 = vsyncpa [#allocation7], 1
    %s1392 = scalar_lea.sflag [#allocation7], 1
    %1393 = vsyncpa %s1392, 1
    %1394 = vsyncpa [#allocation10], 1
    %1395 = vsyncpa [#allocation5], 1
    %s1396 = scalar_lea.sflag [#allocation5], 1
    %1397 = vsyncpa %s1396, 1

</llo_original>
